<compile_context>
chip_gen: v7x
topology: tpu7x:2x2x1
jax: 0.10.0
libtpu: 0.0.40
codegen_flags: <defaults>
</compile_context>

<pallas_src>
import functools
import jax
import jax.numpy as jnp
from jax.experimental import pallas as pl
from jax.experimental.pallas import tpu as pltpu


# -------------------- in-kernel helpers --------------------

def _ln(x, g, b, eps):
    # LayerNorm over the last axis, f32 statistics.
    mu = jnp.mean(x, axis=-1, keepdims=True)
    var = jnp.mean(jnp.square(x - mu), axis=-1, keepdims=True)
    return (x - mu) * jax.lax.rsqrt(var + eps) * g + b


# -------------------- the fused whole-model kernel --------------------

def _bert_kernel(x_emb_ref, eg_ref, eb_ref,
                 wqkv_ref, bqkv_ref, wo_ref, bo_ref, g1_ref, be1_ref,
                 w1_ref, b1f_ref, w2_ref, b2f_ref, g2_ref, be2_ref,
                 wp_ref, bp_ref, wc_ref, bc_ref,
                 logits_ref, x_sc,
                 *, Bt, S, nh, dh, eps):
    H = nh * dh
    l = pl.program_id(1)                           # layer index (inner grid axis)

    # Embedding LayerNorm runs once per batch tile; the result is carried in
    # VMEM scratch across all layer grid steps of this tile.
    @pl.when(l == 0)
    def _():
        x_sc[...] = _ln(x_emb_ref[...], eg_ref[...], eb_ref[...], eps)

    x = x_sc[...]                                  # (Bt*S, H) f32, VMEM-resident
    xb = x.astype(jnp.bfloat16)

    # ---- fused QKV projection: one MXU matmul (bf16 weights, f32 accumulate) ----
    qkv = jnp.dot(xb, wqkv_ref[0], preferred_element_type=jnp.float32) + bqkv_ref[0]

    # ---- multi-head self-attention: batched matmuls over all heads ----
    # Heads become the leading batch dim of a single 3-D einsum (validated
    # single-batch-dim form) instead of nh separate tiny-K dots.
    def split_heads(t2d):                          # (Bt*S, H) -> (nh*Bt, S, dh) bf16
        parts = [t2d[:, h * dh:(h + 1) * dh] for h in range(nh)]
        return jnp.stack(parts, axis=0).reshape(nh * Bt, S, dh).astype(jnp.bfloat16)

    qh = split_heads(qkv[:, :H])
    kh = split_heads(qkv[:, H:2 * H])
    vh = split_heads(qkv[:, 2 * H:])

    scale = 1.0 / float(dh) ** 0.5
    s = jnp.einsum('bqd,bkd->bqk', qh, kh,
                   preferred_element_type=jnp.float32) * scale   # (nh*Bt, S, S) f32
    # TODO(synk): attention_mask is assumed all-ones (padding mask not applied).
    # TODO(synk): for S >= 512 tile the K axis with an online-softmax (flash-style)
    #             loop instead of materializing the full (nh*Bt, S, S) scores.
    p = jnp.exp(s - jnp.max(s, axis=-1, keepdims=True))
    p = p / jnp.sum(p, axis=-1, keepdims=True)     # exact divide for parity
    ctx = jnp.einsum('bqk,bkd->bqd', p.astype(jnp.bfloat16), vh,
                     preferred_element_type=jnp.float32)         # (nh*Bt, S, dh)

    # Reassemble (Bt*S, H) with head h on lanes [h*dh:(h+1)*dh], then ONE
    # full-contraction output projection (BS,H)@(H,H).
    ctx = ctx.reshape(nh, Bt * S, dh)
    ctx2d = jnp.concatenate([ctx[h] for h in range(nh)], axis=-1)
    attn = jnp.dot(ctx2d.astype(jnp.bfloat16), wo_ref[0],
                   preferred_element_type=jnp.float32) + bo_ref[0]

    x1 = _ln(x + attn, g1_ref[0], be1_ref[0], eps)

    # ---- feed-forward (bias + GELU fused in the epilogue) ----
    hmid = jnp.dot(x1.astype(jnp.bfloat16), w1_ref[0],
                   preferred_element_type=jnp.float32) + b1f_ref[0]
    # TODO(synk): HF BERT default is exact erf-GELU; tanh approximation used here.
    hmid = jax.nn.gelu(hmid, approximate=True)
    ffn = jnp.dot(hmid.astype(jnp.bfloat16), w2_ref[0],
                  preferred_element_type=jnp.float32) + b2f_ref[0]
    x2 = _ln(x1 + ffn, g2_ref[0], be2_ref[0], eps)

    x_sc[...] = x2                                 # carry to the next layer

    # ---- last layer only: tanh pooler on [CLS] rows + classifier head ----
    @pl.when(l == pl.num_programs(1) - 1)
    def _():
        cls = x2.reshape(Bt, S, H)[:, 0, :]        # [CLS] row of each sequence
        pooled = jnp.tanh(
            jnp.dot(cls.astype(jnp.bfloat16), wp_ref[...],
                    preferred_element_type=jnp.float32) + bp_ref[...])
        logits = (jnp.dot(pooled.astype(jnp.bfloat16), wc_ref[...],
                          preferred_element_type=jnp.float32) + bc_ref[...])
        logits_ref[0] = logits.astype(logits_ref.dtype)   # lane-dense 128-wide slab


# -------------------- parameters (synthetic, deterministic) --------------------

def init_params(key, cfg):
    H, I, C, L = cfg["hidden"], cfg["intermediate"], cfg["num_classes"], cfg["layers"]
    V, P, T = cfg["vocab"], cfg["max_pos"], cfg["type_vocab"]
    bf = jnp.bfloat16

    def nrm(k, shape, dtype=jnp.float32, scale=0.02):
        return (scale * jax.random.normal(k, shape, dtype=jnp.float32)).astype(dtype)

    ks = iter(jax.random.split(key, 16))
    return {
        "word_emb": nrm(next(ks), (V, H)),
        "pos_emb": nrm(next(ks), (P, H)),
        "type_emb": nrm(next(ks), (T, H)),
        "emb_ln_g": jnp.ones((1, H), jnp.float32),
        "emb_ln_b": jnp.zeros((1, H), jnp.float32),
        # per-layer matmul weights stacked along (L, ...) and stored bf16 in HBM
        "wqkv": nrm(next(ks), (L, H, 3 * H), bf),
        "bqkv": jnp.zeros((L, 1, 3 * H), jnp.float32),
        "wo": nrm(next(ks), (L, H, H), bf),
        "bo": jnp.zeros((L, 1, H), jnp.float32),
        "ln1_g": jnp.ones((L, 1, H), jnp.float32),
        "ln1_b": jnp.zeros((L, 1, H), jnp.float32),
        "w1": nrm(next(ks), (L, H, I), bf),
        "b1": jnp.zeros((L, 1, I), jnp.float32),
        "w2": nrm(next(ks), (L, I, H), bf),
        "b2": jnp.zeros((L, 1, H), jnp.float32),
        "ln2_g": jnp.ones((L, 1, H), jnp.float32),
        "ln2_b": jnp.zeros((L, 1, H), jnp.float32),
        # pooler + classifier
        "wp": nrm(next(ks), (H, H), bf),
        "bp": jnp.zeros((1, H), jnp.float32),
        "wc": nrm(next(ks), (H, C), bf),
        "bc": jnp.zeros((1, C), jnp.float32),
    }


# -------------------- forward pass --------------------

def bert_classifier_forward(params, input_ids, token_type_ids, cfg, *, batch_tile=1):
    B, S = input_ids.shape
    H, nh = cfg["hidden"], cfg["heads"]
    I, C, L = cfg["intermediate"], cfg["num_classes"], cfg["layers"]
    dh = H // nh
    assert B % batch_tile == 0
    Bt = batch_tile                  # batch elements per grid tile (1 -> megacore-friendly)
    n_btiles = B // Bt
    BtS = Bt * S

    # Pad the classifier head to a lane-dense (H, 128k) slab; slice after the call.
    Cp = max(128, ((C + 127) // 128) * 128)
    wc_pad = jnp.zeros((H, Cp), jnp.bfloat16).at[:, :C].set(params["wc"])
    bc_pad = jnp.zeros((1, Cp), jnp.float32).at[:, :C].set(params["bc"])

    # Embedding gathers (data-dependent) are plain-JAX glue; everything after
    # runs inside the single fused Pallas kernel.
    emb = (params["word_emb"][input_ids]
           + params["pos_emb"][None, :S, :]
           + params["type_emb"][token_type_ids])
    x_emb = emb.reshape(B * S, H).astype(jnp.float32)

    kernel = functools.partial(_bert_kernel, Bt=Bt, S=S, nh=nh, dh=dh, eps=1e-12)

    single = pl.Buffered(1)                         # grid-invariant -> no double-buffer
    const2 = lambda b, l: (0, 0)
    per_layer = lambda b, l: (l, 0, 0)
    per_batch = lambda b, l: (b, 0)

    logits_pad = pl.pallas_call(
        kernel,
        out_shape=jax.ShapeDtypeStruct((n_btiles, Bt, Cp), jnp.float32),
        grid=(n_btiles, L),                         # (parallel batch tiles, layers)
        in_specs=[
            pl.BlockSpec((BtS, H), per_batch, pipeline_mode=single),   # x_emb (read at l==0)
            pl.BlockSpec((1, H), const2, pipeline_mode=single),        # emb_ln_g
            pl.BlockSpec((1, H), const2, pipeline_mode=single),        # emb_ln_b
            pl.BlockSpec((1, H, 3 * H), per_layer),  # wqkv (bf16)
            pl.BlockSpec((1, 1, 3 * H), per_layer),  # bqkv
            pl.BlockSpec((1, H, H), per_layer),      # wo (bf16)
            pl.BlockSpec((1, 1, H), per_layer),      # bo
            pl.BlockSpec((1, 1, H), per_layer),      # ln1_g
            pl.BlockSpec((1, 1, H), per_layer),      # ln1_b
            pl.BlockSpec((1, H, I), per_layer),      # w1 (bf16)
            pl.BlockSpec((1, 1, I), per_layer),      # b1
            pl.BlockSpec((1, I, H), per_layer),      # w2 (bf16)
            pl.BlockSpec((1, 1, H), per_layer),      # b2
            pl.BlockSpec((1, 1, H), per_layer),      # ln2_g
            pl.BlockSpec((1, 1, H), per_layer),      # ln2_b
            pl.BlockSpec((H, H), const2, pipeline_mode=single),        # wp (bf16)
            pl.BlockSpec((1, H), const2, pipeline_mode=single),        # bp
            pl.BlockSpec((H, Cp), const2, pipeline_mode=single),       # wc (bf16, padded)
            pl.BlockSpec((1, Cp), const2, pipeline_mode=single),       # bc (padded)
        ],
        out_specs=pl.BlockSpec((1, Bt, Cp), lambda b, l: (b, 0, 0)),
        scratch_shapes=[pltpu.VMEM((BtS, H), jnp.float32)],            # layer-carried acts
        compiler_params=pltpu.CompilerParams(
            dimension_semantics=("parallel", "arbitrary"),  # batch tiles -> v7x megacore
            vmem_limit_bytes=56 * 1024 * 1024),             # fits v7x 64 MiB, ample v5e/v6e
    )(x_emb, params["emb_ln_g"], params["emb_ln_b"],
      params["wqkv"], params["bqkv"], params["wo"], params["bo"],
      params["ln1_g"], params["ln1_b"],
      params["w1"], params["b1"], params["w2"], params["b2"],
      params["ln2_g"], params["ln2_b"],
      params["wp"], params["bp"], wc_pad, bc_pad)

    return logits_pad.reshape(B, Cp)[:, :C]


# -------------------- main --------------------

if __name__ == "__main__":
    cfg = dict(vocab=100, max_pos=16, type_vocab=2, hidden=32, heads=4,
               layers=2, intermediate=64, num_classes=3)

    key = jax.random.PRNGKey(0)
    pkey, ikey = jax.random.split(key)
    params = init_params(pkey, cfg)

    B, S = 2, 8
    input_ids = jax.random.randint(ikey, (B, S), 0, cfg["vocab"], dtype=jnp.int32)
    token_type_ids = jnp.zeros((B, S), dtype=jnp.int32)

    logits = bert_classifier_forward(params, input_ids, token_type_ids, cfg, batch_tile=1)
    logits = jax.block_until_ready(logits)
    assert logits.shape == (B, cfg["num_classes"])
    print("KERNEL_OK")
</pallas_src>

<mosaic_0001>
module attributes {stable_mosaic.version = 11 : i64} {
  func.func @_bert_kernel(%arg0: i32, %arg1: i32, %arg2: memref<8x32xf32, #tpu.memory_space<vmem>>, %arg3: memref<1x32xf32, #tpu.memory_space<vmem>>, %arg4: memref<1x32xf32, #tpu.memory_space<vmem>>, %arg5: memref<1x32x96xbf16, #tpu.memory_space<vmem>>, %arg6: memref<1x1x96xf32, #tpu.memory_space<vmem>>, %arg7: memref<1x32x32xbf16, #tpu.memory_space<vmem>>, %arg8: memref<1x1x32xf32, #tpu.memory_space<vmem>>, %arg9: memref<1x1x32xf32, #tpu.memory_space<vmem>>, %arg10: memref<1x1x32xf32, #tpu.memory_space<vmem>>, %arg11: memref<1x32x64xbf16, #tpu.memory_space<vmem>>, %arg12: memref<1x1x64xf32, #tpu.memory_space<vmem>>, %arg13: memref<1x64x32xbf16, #tpu.memory_space<vmem>>, %arg14: memref<1x1x32xf32, #tpu.memory_space<vmem>>, %arg15: memref<1x1x32xf32, #tpu.memory_space<vmem>>, %arg16: memref<1x1x32xf32, #tpu.memory_space<vmem>>, %arg17: memref<32x32xbf16, #tpu.memory_space<vmem>>, %arg18: memref<1x32xf32, #tpu.memory_space<vmem>>, %arg19: memref<32x128xbf16, #tpu.memory_space<vmem>>, %arg20: memref<1x128xf32, #tpu.memory_space<vmem>>, %arg21: memref<1x1x128xf32, #tpu.memory_space<vmem>>, %arg22: memref<8x32xf32, #tpu.memory_space<vmem>>) attributes {dimension_semantics = [#tpu.dimension_semantics<parallel>, #tpu.dimension_semantics<arbitrary>], iteration_bounds = array<i64: 2, 2>, scalar_prefetch = 0 : i64, scratch_operands = 1 : i64, tpu.core_type = #tpu.core_type<tc>, window_params = [{pipeline_mode = #tpu.pipeline_mode<synchronous>, transform_indices = @transform_0, window_bounds = array<i64: 8, 32>}, {pipeline_mode = #tpu.pipeline_mode<synchronous>, transform_indices = @transform_1, window_bounds = array<i64: 1, 32>}, {pipeline_mode = #tpu.pipeline_mode<synchronous>, transform_indices = @transform_2, window_bounds = array<i64: 1, 32>}, {transform_indices = @transform_3, window_bounds = array<i64: 1, 32, 96>}, {transform_indices = @transform_4, window_bounds = array<i64: 1, 1, 96>}, {transform_indices = @transform_5, window_bounds = array<i64: 1, 32, 32>}, {transform_indices = @transform_6, window_bounds = array<i64: 1, 1, 32>}, {transform_indices = @transform_7, window_bounds = array<i64: 1, 1, 32>}, {transform_indices = @transform_8, window_bounds = array<i64: 1, 1, 32>}, {transform_indices = @transform_9, window_bounds = array<i64: 1, 32, 64>}, {transform_indices = @transform_10, window_bounds = array<i64: 1, 1, 64>}, {transform_indices = @transform_11, window_bounds = array<i64: 1, 64, 32>}, {transform_indices = @transform_12, window_bounds = array<i64: 1, 1, 32>}, {transform_indices = @transform_13, window_bounds = array<i64: 1, 1, 32>}, {transform_indices = @transform_14, window_bounds = array<i64: 1, 1, 32>}, {pipeline_mode = #tpu.pipeline_mode<synchronous>, transform_indices = @transform_15, window_bounds = array<i64: 32, 32>}, {pipeline_mode = #tpu.pipeline_mode<synchronous>, transform_indices = @transform_16, window_bounds = array<i64: 1, 32>}, {pipeline_mode = #tpu.pipeline_mode<synchronous>, transform_indices = @transform_17, window_bounds = array<i64: 32, 128>}, {pipeline_mode = #tpu.pipeline_mode<synchronous>, transform_indices = @transform_18, window_bounds = array<i64: 1, 128>}, {transform_indices = @transform_19, window_bounds = array<i64: 1, 1, 128>}]} {
    %c0_i32 = arith.constant 0 : i32
    %0 = arith.cmpi eq, %arg1, %c0_i32 : i32
    %1 = arith.extui %0 : i1 to i32
    %c0_i32_0 = arith.constant 0 : i32
    %2 = arith.cmpi ne, %1, %c0_i32_0 : i32
    scf.if %2 {
      %c0_63 = arith.constant 0 : index
      %c0_64 = arith.constant 0 : index
      %163 = vector.load %arg2[%c0_63, %c0_64] : memref<8x32xf32, #tpu.memory_space<vmem>>, vector<8x32xf32>
      %c0_65 = arith.constant 0 : index
      %c0_66 = arith.constant 0 : index
      %164 = vector.load %arg3[%c0_65, %c0_66] : memref<1x32xf32, #tpu.memory_space<vmem>>, vector<1x32xf32>
      %c0_67 = arith.constant 0 : index
      %c0_68 = arith.constant 0 : index
      %165 = vector.load %arg4[%c0_67, %c0_68] : memref<1x32xf32, #tpu.memory_space<vmem>>, vector<1x32xf32>
      %cst_69 = arith.constant dense<0.000000e+00> : vector<8xf32>
      %166 = vector.multi_reduction <add>, %163, %cst_69 [1] : vector<8x32xf32> to vector<8xf32>
      %167 = vector.shape_cast %166 : vector<8xf32> to vector<8x1xf32>
      %cst_70 = arith.constant 3.200000e+01 : f32
      %168 = vector.broadcast %cst_70 : f32 to vector<8x1xf32>
      %169 = arith.divf %167, %168 : vector<8x1xf32>
      %170 = vector.broadcast %169 : vector<8x1xf32> to vector<8x32xf32>
      %171 = arith.subf %163, %170 : vector<8x32xf32>
      %172 = arith.mulf %171, %171 : vector<8x32xf32>
      %cst_71 = arith.constant dense<0.000000e+00> : vector<8xf32>
      %173 = vector.multi_reduction <add>, %172, %cst_71 [1] : vector<8x32xf32> to vector<8xf32>
      %174 = vector.shape_cast %173 : vector<8xf32> to vector<8x1xf32>
      %cst_72 = arith.constant 3.200000e+01 : f32
      %175 = vector.broadcast %cst_72 : f32 to vector<8x1xf32>
      %176 = arith.divf %174, %175 : vector<8x1xf32>
      %177 = vector.broadcast %169 : vector<8x1xf32> to vector<8x32xf32>
      %178 = arith.subf %163, %177 : vector<8x32xf32>
      %cst_73 = arith.constant 9.99999996E-13 : f32
      %179 = vector.broadcast %cst_73 : f32 to vector<8x1xf32>
      %180 = arith.addf %176, %179 : vector<8x1xf32>
      %181 = math.rsqrt %180 : vector<8x1xf32>
      %182 = vector.broadcast %181 : vector<8x1xf32> to vector<8x32xf32>
      %183 = arith.mulf %178, %182 : vector<8x32xf32>
      %184 = vector.broadcast %164 : vector<1x32xf32> to vector<8x32xf32>
      %185 = arith.mulf %183, %184 : vector<8x32xf32>
      %186 = vector.broadcast %165 : vector<1x32xf32> to vector<8x32xf32>
      %187 = arith.addf %185, %186 : vector<8x32xf32>
      %c0_74 = arith.constant 0 : index
      %c0_75 = arith.constant 0 : index
      %188 = vector.load %arg22[%c0_74, %c0_75] : memref<8x32xf32, #tpu.memory_space<vmem>>, vector<8x32xf32>
      tpu.vector_store %arg22[%c0_74, %c0_75], %187 {strides = array<i32>} : memref<8x32xf32, #tpu.memory_space<vmem>>, vector<8x32xf32>,
    } else {
    }
    %c0 = arith.constant 0 : index
    %c0_1 = arith.constant 0 : index
    %3 = vector.load %arg22[%c0, %c0_1] : memref<8x32xf32, #tpu.memory_space<vmem>>, vector<8x32xf32>
    %4 = arith.truncf %3 : vector<8x32xf32> to vector<8x32xbf16>
    %c0_2 = arith.constant 0 : index
    %c0_3 = arith.constant 0 : index
    %c0_4 = arith.constant 0 : index
    %5 = vector.load %arg5[%c0_2, %c0_3, %c0_4] : memref<1x32x96xbf16, #tpu.memory_space<vmem>>, vector<1x32x96xbf16>
    %6 = vector.shape_cast %5 : vector<1x32x96xbf16> to vector<32x96xbf16>
    %cst = arith.constant dense<0.000000e+00> : vector<8x96xf32>
    %7 = tpu.matmul %4, %6, %cst {dimension_numbers = #tpu.dot_dimension_numbers<[1], [0], [0], [1], [0, 0, 1, 1], [], []>} : vector<8x32xbf16>, vector<32x96xbf16>, vector<8x96xf32> -> vector<8x96xf32>
    %c0_5 = arith.constant 0 : index
    %c0_6 = arith.constant 0 : index
    %c0_7 = arith.constant 0 : index
    %8 = vector.load %arg6[%c0_5, %c0_6, %c0_7] : memref<1x1x96xf32, #tpu.memory_space<vmem>>, vector<1x1x96xf32>
    %9 = vector.shape_cast %8 : vector<1x1x96xf32> to vector<1x96xf32>
    %10 = vector.broadcast %9 : vector<1x96xf32> to vector<8x96xf32>
    %11 = arith.addf %7, %10 : vector<8x96xf32>
    %12 = vector.extract_strided_slice %11 {offsets = [0, 0], sizes = [8, 32], strides = [1, 1]} : vector<8x96xf32> to vector<8x32xf32>
    %13 = vector.extract_strided_slice %12 {offsets = [0, 0], sizes = [8, 8], strides = [1, 1]} : vector<8x32xf32> to vector<8x8xf32>
    %14 = vector.extract_strided_slice %12 {offsets = [0, 8], sizes = [8, 8], strides = [1, 1]} : vector<8x32xf32> to vector<8x8xf32>
    %15 = vector.extract_strided_slice %12 {offsets = [0, 16], sizes = [8, 8], strides = [1, 1]} : vector<8x32xf32> to vector<8x8xf32>
    %16 = vector.extract_strided_slice %12 {offsets = [0, 24], sizes = [8, 8], strides = [1, 1]} : vector<8x32xf32> to vector<8x8xf32>
    %17 = vector.shape_cast %13 : vector<8x8xf32> to vector<1x8x8xf32>
    %18 = vector.shape_cast %14 : vector<8x8xf32> to vector<1x8x8xf32>
    %19 = vector.shape_cast %15 : vector<8x8xf32> to vector<1x8x8xf32>
    %20 = vector.shape_cast %16 : vector<8x8xf32> to vector<1x8x8xf32>
    %21 = tpu.concatenate %17, %18, %19, %20 in 0 : vector<1x8x8xf32>, vector<1x8x8xf32>, vector<1x8x8xf32>, vector<1x8x8xf32> -> vector<4x8x8xf32>
    %22 = arith.truncf %21 : vector<4x8x8xf32> to vector<4x8x8xbf16>
    %23 = vector.extract_strided_slice %11 {offsets = [0, 32], sizes = [8, 32], strides = [1, 1]} : vector<8x96xf32> to vector<8x32xf32>
    %24 = vector.extract_strided_slice %23 {offsets = [0, 0], sizes = [8, 8], strides = [1, 1]} : vector<8x32xf32> to vector<8x8xf32>
    %25 = vector.extract_strided_slice %23 {offsets = [0, 8], sizes = [8, 8], strides = [1, 1]} : vector<8x32xf32> to vector<8x8xf32>
    %26 = vector.extract_strided_slice %23 {offsets = [0, 16], sizes = [8, 8], strides = [1, 1]} : vector<8x32xf32> to vector<8x8xf32>
    %27 = vector.extract_strided_slice %23 {offsets = [0, 24], sizes = [8, 8], strides = [1, 1]} : vector<8x32xf32> to vector<8x8xf32>
    %28 = vector.shape_cast %24 : vector<8x8xf32> to vector<1x8x8xf32>
    %29 = vector.shape_cast %25 : vector<8x8xf32> to vector<1x8x8xf32>
    %30 = vector.shape_cast %26 : vector<8x8xf32> to vector<1x8x8xf32>
    %31 = vector.shape_cast %27 : vector<8x8xf32> to vector<1x8x8xf32>
    %32 = tpu.concatenate %28, %29, %30, %31 in 0 : vector<1x8x8xf32>, vector<1x8x8xf32>, vector<1x8x8xf32>, vector<1x8x8xf32> -> vector<4x8x8xf32>
    %33 = arith.truncf %32 : vector<4x8x8xf32> to vector<4x8x8xbf16>
    %34 = vector.extract_strided_slice %11 {offsets = [0, 64], sizes = [8, 32], strides = [1, 1]} : vector<8x96xf32> to vector<8x32xf32>
    %35 = vector.extract_strided_slice %34 {offsets = [0, 0], sizes = [8, 8], strides = [1, 1]} : vector<8x32xf32> to vector<8x8xf32>
    %36 = vector.extract_strided_slice %34 {offsets = [0, 8], sizes = [8, 8], strides = [1, 1]} : vector<8x32xf32> to vector<8x8xf32>
    %37 = vector.extract_strided_slice %34 {offsets = [0, 16], sizes = [8, 8], strides = [1, 1]} : vector<8x32xf32> to vector<8x8xf32>
    %38 = vector.extract_strided_slice %34 {offsets = [0, 24], sizes = [8, 8], strides = [1, 1]} : vector<8x32xf32> to vector<8x8xf32>
    %39 = vector.shape_cast %35 : vector<8x8xf32> to vector<1x8x8xf32>
    %40 = vector.shape_cast %36 : vector<8x8xf32> to vector<1x8x8xf32>
    %41 = vector.shape_cast %37 : vector<8x8xf32> to vector<1x8x8xf32>
    %42 = vector.shape_cast %38 : vector<8x8xf32> to vector<1x8x8xf32>
    %43 = tpu.concatenate %39, %40, %41, %42 in 0 : vector<1x8x8xf32>, vector<1x8x8xf32>, vector<1x8x8xf32>, vector<1x8x8xf32> -> vector<4x8x8xf32>
    %44 = arith.truncf %43 : vector<4x8x8xf32> to vector<4x8x8xbf16>
    "tpu.trace_start"() <{level = 10 : i32, message = "bqd,bkd->bqk"}> : () -> ()
    %cst_8 = arith.constant dense<0.000000e+00> : vector<4x8x8xf32>
    %45 = tpu.matmul %22, %33, %cst_8 {dimension_numbers = #tpu.dot_dimension_numbers<[2], [2], [1], [1], [0, 0, 0, 1, 1, 1], [0], [0]>} : vector<4x8x8xbf16>, vector<4x8x8xbf16>, vector<4x8x8xf32> -> vector<4x8x8xf32>
    "tpu.trace_stop"() : () -> ()
    %cst_9 = arith.constant 0.353553385 : f32
    %46 = vector.broadcast %cst_9 : f32 to vector<4x8x8xf32>
    %47 = arith.mulf %45, %46 : vector<4x8x8xf32>
    %cst_10 = arith.constant dense<0xFF800000> : vector<4x8xf32>
    %48 = vector.multi_reduction <maximumf>, %47, %cst_10 [2] : vector<4x8x8xf32> to vector<4x8xf32>
    %49 = vector.shape_cast %48 : vector<4x8xf32> to vector<4x8x1xf32>
    %50 = vector.broadcast %49 : vector<4x8x1xf32> to vector<4x8x8xf32>
    %51 = arith.subf %47, %50 : vector<4x8x8xf32>
    %52 = math.exp %51 : vector<4x8x8xf32>
    %cst_11 = arith.constant dense<0.000000e+00> : vector<4x8xf32>
    %53 = vector.multi_reduction <add>, %52, %cst_11 [2] : vector<4x8x8xf32> to vector<4x8xf32>
    %54 = vector.shape_cast %53 : vector<4x8xf32> to vector<4x8x1xf32>
    %55 = vector.broadcast %54 : vector<4x8x1xf32> to vector<4x8x8xf32>
    %56 = arith.divf %52, %55 : vector<4x8x8xf32>
    %57 = arith.truncf %56 : vector<4x8x8xf32> to vector<4x8x8xbf16>
    "tpu.trace_start"() <{level = 10 : i32, message = "bqk,bkd->bqd"}> : () -> ()
    %cst_12 = arith.constant dense<0.000000e+00> : vector<4x8x8xf32>
    %58 = tpu.matmul %57, %44, %cst_12 {dimension_numbers = #tpu.dot_dimension_numbers<[2], [1], [1], [2], [0, 0, 0, 1, 1, 2], [0], [0]>} : vector<4x8x8xbf16>, vector<4x8x8xbf16>, vector<4x8x8xf32> -> vector<4x8x8xf32>
    "tpu.trace_stop"() : () -> ()
    %59 = vector.extract_strided_slice %58 {offsets = [0, 0, 0], sizes = [1, 8, 8], strides = [1, 1, 1]} : vector<4x8x8xf32> to vector<1x8x8xf32>
    %60 = vector.shape_cast %59 : vector<1x8x8xf32> to vector<8x8xf32>
    %61 = vector.extract_strided_slice %58 {offsets = [1, 0, 0], sizes = [1, 8, 8], strides = [1, 1, 1]} : vector<4x8x8xf32> to vector<1x8x8xf32>
    %62 = vector.shape_cast %61 : vector<1x8x8xf32> to vector<8x8xf32>
    %63 = vector.extract_strided_slice %58 {offsets = [2, 0, 0], sizes = [1, 8, 8], strides = [1, 1, 1]} : vector<4x8x8xf32> to vector<1x8x8xf32>
    %64 = vector.shape_cast %63 : vector<1x8x8xf32> to vector<8x8xf32>
    %65 = vector.extract_strided_slice %58 {offsets = [3, 0, 0], sizes = [1, 8, 8], strides = [1, 1, 1]} : vector<4x8x8xf32> to vector<1x8x8xf32>
    %66 = vector.shape_cast %65 : vector<1x8x8xf32> to vector<8x8xf32>
    %67 = tpu.concatenate %60, %62, %64, %66 in 1 : vector<8x8xf32>, vector<8x8xf32>, vector<8x8xf32>, vector<8x8xf32> -> vector<8x32xf32>
    %68 = arith.truncf %67 : vector<8x32xf32> to vector<8x32xbf16>
    %c0_13 = arith.constant 0 : index
    %c0_14 = arith.constant 0 : index
    %c0_15 = arith.constant 0 : index
    %69 = vector.load %arg7[%c0_13, %c0_14, %c0_15] : memref<1x32x32xbf16, #tpu.memory_space<vmem>>, vector<1x32x32xbf16>
    %70 = vector.shape_cast %69 : vector<1x32x32xbf16> to vector<32x32xbf16>
    %cst_16 = arith.constant dense<0.000000e+00> : vector<8x32xf32>
    %71 = tpu.matmul %68, %70, %cst_16 {dimension_numbers = #tpu.dot_dimension_numbers<[1], [0], [0], [1], [0, 0, 1, 1], [], []>} : vector<8x32xbf16>, vector<32x32xbf16>, vector<8x32xf32> -> vector<8x32xf32>
    %c0_17 = arith.constant 0 : index
    %c0_18 = arith.constant 0 : index
    %c0_19 = arith.constant 0 : index
    %72 = vector.load %arg8[%c0_17, %c0_18, %c0_19] : memref<1x1x32xf32, #tpu.memory_space<vmem>>, vector<1x1x32xf32>
    %73 = vector.shape_cast %72 : vector<1x1x32xf32> to vector<1x32xf32>
    %74 = vector.broadcast %73 : vector<1x32xf32> to vector<8x32xf32>
    %75 = arith.addf %71, %74 : vector<8x32xf32>
    %76 = arith.addf %3, %75 : vector<8x32xf32>
    %c0_20 = arith.constant 0 : index
    %c0_21 = arith.constant 0 : index
    %c0_22 = arith.constant 0 : index
    %77 = vector.load %arg9[%c0_20, %c0_21, %c0_22] : memref<1x1x32xf32, #tpu.memory_space<vmem>>, vector<1x1x32xf32>
    %78 = vector.shape_cast %77 : vector<1x1x32xf32> to vector<1x32xf32>
    %c0_23 = arith.constant 0 : index
    %c0_24 = arith.constant 0 : index
    %c0_25 = arith.constant 0 : index
    %79 = vector.load %arg10[%c0_23, %c0_24, %c0_25] : memref<1x1x32xf32, #tpu.memory_space<vmem>>, vector<1x1x32xf32>
    %80 = vector.shape_cast %79 : vector<1x1x32xf32> to vector<1x32xf32>
    %cst_26 = arith.constant dense<0.000000e+00> : vector<8xf32>
    %81 = vector.multi_reduction <add>, %76, %cst_26 [1] : vector<8x32xf32> to vector<8xf32>
    %82 = vector.shape_cast %81 : vector<8xf32> to vector<8x1xf32>
    %cst_27 = arith.constant 3.200000e+01 : f32
    %83 = vector.broadcast %cst_27 : f32 to vector<8x1xf32>
    %84 = arith.divf %82, %83 : vector<8x1xf32>
    %85 = vector.broadcast %84 : vector<8x1xf32> to vector<8x32xf32>
    %86 = arith.subf %76, %85 : vector<8x32xf32>
    %87 = arith.mulf %86, %86 : vector<8x32xf32>
    %cst_28 = arith.constant dense<0.000000e+00> : vector<8xf32>
    %88 = vector.multi_reduction <add>, %87, %cst_28 [1] : vector<8x32xf32> to vector<8xf32>
    %89 = vector.shape_cast %88 : vector<8xf32> to vector<8x1xf32>
    %cst_29 = arith.constant 3.200000e+01 : f32
    %90 = vector.broadcast %cst_29 : f32 to vector<8x1xf32>
    %91 = arith.divf %89, %90 : vector<8x1xf32>
    %92 = vector.broadcast %84 : vector<8x1xf32> to vector<8x32xf32>
    %93 = arith.subf %76, %92 : vector<8x32xf32>
    %cst_30 = arith.constant 9.99999996E-13 : f32
    %94 = vector.broadcast %cst_30 : f32 to vector<8x1xf32>
    %95 = arith.addf %91, %94 : vector<8x1xf32>
    %96 = math.rsqrt %95 : vector<8x1xf32>
    %97 = vector.broadcast %96 : vector<8x1xf32> to vector<8x32xf32>
    %98 = arith.mulf %93, %97 : vector<8x32xf32>
    %99 = vector.broadcast %78 : vector<1x32xf32> to vector<8x32xf32>
    %100 = arith.mulf %98, %99 : vector<8x32xf32>
    %101 = vector.broadcast %80 : vector<1x32xf32> to vector<8x32xf32>
    %102 = arith.addf %100, %101 : vector<8x32xf32>
    %103 = arith.truncf %102 : vector<8x32xf32> to vector<8x32xbf16>
    %c0_31 = arith.constant 0 : index
    %c0_32 = arith.constant 0 : index
    %c0_33 = arith.constant 0 : index
    %104 = vector.load %arg11[%c0_31, %c0_32, %c0_33] : memref<1x32x64xbf16, #tpu.memory_space<vmem>>, vector<1x32x64xbf16>
    %105 = vector.shape_cast %104 : vector<1x32x64xbf16> to vector<32x64xbf16>
    %cst_34 = arith.constant dense<0.000000e+00> : vector<8x64xf32>
    %106 = tpu.matmul %103, %105, %cst_34 {dimension_numbers = #tpu.dot_dimension_numbers<[1], [0], [0], [1], [0, 0, 1, 1], [], []>} : vector<8x32xbf16>, vector<32x64xbf16>, vector<8x64xf32> -> vector<8x64xf32>
    %c0_35 = arith.constant 0 : index
    %c0_36 = arith.constant 0 : index
    %c0_37 = arith.constant 0 : index
    %107 = vector.load %arg12[%c0_35, %c0_36, %c0_37] : memref<1x1x64xf32, #tpu.memory_space<vmem>>, vector<1x1x64xf32>
    %108 = vector.shape_cast %107 : vector<1x1x64xf32> to vector<1x64xf32>
    %109 = vector.broadcast %108 : vector<1x64xf32> to vector<8x64xf32>
    %110 = arith.addf %106, %109 : vector<8x64xf32>
    %111 = arith.mulf %110, %110 : vector<8x64xf32>
    %112 = arith.mulf %110, %111 : vector<8x64xf32>
    %cst_38 = arith.constant 4.471500e-02 : f32
    %113 = vector.broadcast %cst_38 : f32 to vector<8x64xf32>
    %114 = arith.mulf %113, %112 : vector<8x64xf32>
    %115 = arith.addf %110, %114 : vector<8x64xf32>
    %cst_39 = arith.constant 0.797884583 : f32
    %116 = vector.broadcast %cst_39 : f32 to vector<8x64xf32>
    %117 = arith.mulf %116, %115 : vector<8x64xf32>
    %118 = math.tanh %117 : vector<8x64xf32>
    %cst_40 = arith.constant 1.000000e+00 : f32
    %119 = vector.broadcast %cst_40 : f32 to vector<8x64xf32>
    %120 = arith.addf %119, %118 : vector<8x64xf32>
    %cst_41 = arith.constant 5.000000e-01 : f32
    %121 = vector.broadcast %cst_41 : f32 to vector<8x64xf32>
    %122 = arith.mulf %121, %120 : vector<8x64xf32>
    %123 = arith.mulf %110, %122 : vector<8x64xf32>
    %124 = arith.truncf %123 : vector<8x64xf32> to vector<8x64xbf16>
    %c0_42 = arith.constant 0 : index
    %c0_43 = arith.constant 0 : index
    %c0_44 = arith.constant 0 : index
    %125 = vector.load %arg13[%c0_42, %c0_43, %c0_44] : memref<1x64x32xbf16, #tpu.memory_space<vmem>>, vector<1x64x32xbf16>
    %126 = vector.shape_cast %125 : vector<1x64x32xbf16> to vector<64x32xbf16>
    %cst_45 = arith.constant dense<0.000000e+00> : vector<8x32xf32>
    %127 = tpu.matmul %124, %126, %cst_45 {dimension_numbers = #tpu.dot_dimension_numbers<[1], [0], [0], [1], [0, 0, 1, 1], [], []>} : vector<8x64xbf16>, vector<64x32xbf16>, vector<8x32xf32> -> vector<8x32xf32>
    %c0_46 = arith.constant 0 : index
    %c0_47 = arith.constant 0 : index
    %c0_48 = arith.constant 0 : index
    %128 = vector.load %arg14[%c0_46, %c0_47, %c0_48] : memref<1x1x32xf32, #tpu.memory_space<vmem>>, vector<1x1x32xf32>
    %129 = vector.shape_cast %128 : vector<1x1x32xf32> to vector<1x32xf32>
    %130 = vector.broadcast %129 : vector<1x32xf32> to vector<8x32xf32>
    %131 = arith.addf %127, %130 : vector<8x32xf32>
    %132 = arith.addf %102, %131 : vector<8x32xf32>
    %c0_49 = arith.constant 0 : index
    %c0_50 = arith.constant 0 : index
    %c0_51 = arith.constant 0 : index
    %133 = vector.load %arg15[%c0_49, %c0_50, %c0_51] : memref<1x1x32xf32, #tpu.memory_space<vmem>>, vector<1x1x32xf32>
    %134 = vector.shape_cast %133 : vector<1x1x32xf32> to vector<1x32xf32>
    %c0_52 = arith.constant 0 : index
    %c0_53 = arith.constant 0 : index
    %c0_54 = arith.constant 0 : index
    %135 = vector.load %arg16[%c0_52, %c0_53, %c0_54] : memref<1x1x32xf32, #tpu.memory_space<vmem>>, vector<1x1x32xf32>
    %136 = vector.shape_cast %135 : vector<1x1x32xf32> to vector<1x32xf32>
    %cst_55 = arith.constant dense<0.000000e+00> : vector<8xf32>
    %137 = vector.multi_reduction <add>, %132, %cst_55 [1] : vector<8x32xf32> to vector<8xf32>
    %138 = vector.shape_cast %137 : vector<8xf32> to vector<8x1xf32>
    %cst_56 = arith.constant 3.200000e+01 : f32
    %139 = vector.broadcast %cst_56 : f32 to vector<8x1xf32>
    %140 = arith.divf %138, %139 : vector<8x1xf32>
    %141 = vector.broadcast %140 : vector<8x1xf32> to vector<8x32xf32>
    %142 = arith.subf %132, %141 : vector<8x32xf32>
    %143 = arith.mulf %142, %142 : vector<8x32xf32>
    %cst_57 = arith.constant dense<0.000000e+00> : vector<8xf32>
    %144 = vector.multi_reduction <add>, %143, %cst_57 [1] : vector<8x32xf32> to vector<8xf32>
    %145 = vector.shape_cast %144 : vector<8xf32> to vector<8x1xf32>
    %cst_58 = arith.constant 3.200000e+01 : f32
    %146 = vector.broadcast %cst_58 : f32 to vector<8x1xf32>
    %147 = arith.divf %145, %146 : vector<8x1xf32>
    %148 = vector.broadcast %140 : vector<8x1xf32> to vector<8x32xf32>
    %149 = arith.subf %132, %148 : vector<8x32xf32>
    %cst_59 = arith.constant 9.99999996E-13 : f32
    %150 = vector.broadcast %cst_59 : f32 to vector<8x1xf32>
    %151 = arith.addf %147, %150 : vector<8x1xf32>
    %152 = math.rsqrt %151 : vector<8x1xf32>
    %153 = vector.broadcast %152 : vector<8x1xf32> to vector<8x32xf32>
    %154 = arith.mulf %149, %153 : vector<8x32xf32>
    %155 = vector.broadcast %134 : vector<1x32xf32> to vector<8x32xf32>
    %156 = arith.mulf %154, %155 : vector<8x32xf32>
    %157 = vector.broadcast %136 : vector<1x32xf32> to vector<8x32xf32>
    %158 = arith.addf %156, %157 : vector<8x32xf32>
    %c0_60 = arith.constant 0 : index
    %c0_61 = arith.constant 0 : index
    %159 = vector.load %arg22[%c0_60, %c0_61] : memref<8x32xf32, #tpu.memory_space<vmem>>, vector<8x32xf32>
    tpu.vector_store %arg22[%c0_60, %c0_61], %158 {strides = array<i32>} : memref<8x32xf32, #tpu.memory_space<vmem>>, vector<8x32xf32>,
    %c1_i32 = arith.constant 1 : i32
    %160 = arith.cmpi eq, %arg1, %c1_i32 : i32
    %161 = arith.extui %160 : i1 to i32
    %c0_i32_62 = arith.constant 0 : i32
    %162 = arith.cmpi ne, %161, %c0_i32_62 : i32
    scf.if %162 {
      %163 = vector.shape_cast %158 : vector<8x32xf32> to vector<1x8x32xf32>
      %164 = vector.extract_strided_slice %163 {offsets = [0, 0, 0], sizes = [1, 1, 32], strides = [1, 1, 1]} : vector<1x8x32xf32> to vector<1x1x32xf32>
      %165 = vector.shape_cast %164 : vector<1x1x32xf32> to vector<1x32xf32>
      %166 = arith.truncf %165 : vector<1x32xf32> to vector<1x32xbf16>
      %c0_63 = arith.constant 0 : index
      %c0_64 = arith.constant 0 : index
      %167 = vector.load %arg17[%c0_63, %c0_64] : memref<32x32xbf16, #tpu.memory_space<vmem>>, vector<32x32xbf16>
      %cst_65 = arith.constant dense<0.000000e+00> : vector<1x32xf32>
      %168 = tpu.matmul %166, %167, %cst_65 {dimension_numbers = #tpu.dot_dimension_numbers<[1], [0], [0], [1], [0, 0, 1, 1], [], []>} : vector<1x32xbf16>, vector<32x32xbf16>, vector<1x32xf32> -> vector<1x32xf32>
      %c0_66 = arith.constant 0 : index
      %c0_67 = arith.constant 0 : index
      %169 = vector.load %arg18[%c0_66, %c0_67] : memref<1x32xf32, #tpu.memory_space<vmem>>, vector<1x32xf32>
      %170 = arith.addf %168, %169 : vector<1x32xf32>
      %171 = math.tanh %170 : vector<1x32xf32>
      %172 = arith.truncf %171 : vector<1x32xf32> to vector<1x32xbf16>
      %c0_68 = arith.constant 0 : index
      %c0_69 = arith.constant 0 : index
      %173 = vector.load %arg19[%c0_68, %c0_69] : memref<32x128xbf16, #tpu.memory_space<vmem>>, vector<32x128xbf16>
      %cst_70 = arith.constant dense<0.000000e+00> : vector<1x128xf32>
      %174 = tpu.matmul %172, %173, %cst_70 {dimension_numbers = #tpu.dot_dimension_numbers<[1], [0], [0], [1], [0, 0, 1, 1], [], []>} : vector<1x32xbf16>, vector<32x128xbf16>, vector<1x128xf32> -> vector<1x128xf32>
      %c0_71 = arith.constant 0 : index
      %c0_72 = arith.constant 0 : index
      %175 = vector.load %arg20[%c0_71, %c0_72] : memref<1x128xf32, #tpu.memory_space<vmem>>, vector<1x128xf32>
      %176 = arith.addf %174, %175 : vector<1x128xf32>
      %c0_73 = arith.constant 0 : index
      %c0_74 = arith.constant 0 : index
      %c0_75 = arith.constant 0 : index
      %177 = vector.load %arg21[%c0_73, %c0_74, %c0_75] : memref<1x1x128xf32, #tpu.memory_space<vmem>>, vector<1x1x128xf32>
      %178 = vector.shape_cast %177 : vector<1x1x128xf32> to vector<1x128xf32>
      %179 = vector.shape_cast %176 : vector<1x128xf32> to vector<1x1x128xf32>
      tpu.vector_store %arg21[%c0_73, %c0_74, %c0_75], %179 {strides = array<i32>} : memref<1x1x128xf32, #tpu.memory_space<vmem>>, vector<1x1x128xf32>,
    } else {
    }
    return
  }
  func.func @transform_0(%arg0: i32, %arg1: i32) -> (i32, i32) {
    %c0_i32 = arith.constant 0 : i32
    %c0_i32_0 = arith.constant 0 : i32
    return %arg0, %c0_i32 : i32, i32
  }
  func.func @transform_1(%arg0: i32, %arg1: i32) -> (i32, i32) {
    %c0_i32 = arith.constant 0 : i32
    %c0_i32_0 = arith.constant 0 : i32
    %c0_i32_1 = arith.constant 0 : i32
    return %c0_i32, %c0_i32_0 : i32, i32
  }
  func.func @transform_2(%arg0: i32, %arg1: i32) -> (i32, i32) {
    %c0_i32 = arith.constant 0 : i32
    %c0_i32_0 = arith.constant 0 : i32
    %c0_i32_1 = arith.constant 0 : i32
    return %c0_i32, %c0_i32_0 : i32, i32
  }
  func.func @transform_3(%arg0: i32, %arg1: i32) -> (i32, i32, i32) {
    %c0_i32 = arith.constant 0 : i32
    %c0_i32_0 = arith.constant 0 : i32
    %c0_i32_1 = arith.constant 0 : i32
    return %arg1, %c0_i32, %c0_i32_0 : i32, i32, i32
  }
  func.func @transform_4(%arg0: i32, %arg1: i32) -> (i32, i32, i32) {
    %c0_i32 = arith.constant 0 : i32
    %c0_i32_0 = arith.constant 0 : i32
    %c0_i32_1 = arith.constant 0 : i32
    return %arg1, %c0_i32, %c0_i32_0 : i32, i32, i32
  }
  func.func @transform_5(%arg0: i32, %arg1: i32) -> (i32, i32, i32) {
    %c0_i32 = arith.constant 0 : i32
    %c0_i32_0 = arith.constant 0 : i32
    %c0_i32_1 = arith.constant 0 : i32
    return %arg1, %c0_i32, %c0_i32_0 : i32, i32, i32
  }
  func.func @transform_6(%arg0: i32, %arg1: i32) -> (i32, i32, i32) {
    %c0_i32 = arith.constant 0 : i32
    %c0_i32_0 = arith.constant 0 : i32
    %c0_i32_1 = arith.constant 0 : i32
    return %arg1, %c0_i32, %c0_i32_0 : i32, i32, i32
  }
  func.func @transform_7(%arg0: i32, %arg1: i32) -> (i32, i32, i32) {
    %c0_i32 = arith.constant 0 : i32
    %c0_i32_0 = arith.constant 0 : i32
    %c0_i32_1 = arith.constant 0 : i32
    return %arg1, %c0_i32, %c0_i32_0 : i32, i32, i32
  }
  func.func @transform_8(%arg0: i32, %arg1: i32) -> (i32, i32, i32) {
    %c0_i32 = arith.constant 0 : i32
    %c0_i32_0 = arith.constant 0 : i32
    %c0_i32_1 = arith.constant 0 : i32
    return %arg1, %c0_i32, %c0_i32_0 : i32, i32, i32
  }
  func.func @transform_9(%arg0: i32, %arg1: i32) -> (i32, i32, i32) {
    %c0_i32 = arith.constant 0 : i32
    %c0_i32_0 = arith.constant 0 : i32
    %c0_i32_1 = arith.constant 0 : i32
    return %arg1, %c0_i32, %c0_i32_0 : i32, i32, i32
  }
  func.func @transform_10(%arg0: i32, %arg1: i32) -> (i32, i32, i32) {
    %c0_i32 = arith.constant 0 : i32
    %c0_i32_0 = arith.constant 0 : i32
    %c0_i32_1 = arith.constant 0 : i32
    return %arg1, %c0_i32, %c0_i32_0 : i32, i32, i32
  }
  func.func @transform_11(%arg0: i32, %arg1: i32) -> (i32, i32, i32) {
    %c0_i32 = arith.constant 0 : i32
    %c0_i32_0 = arith.constant 0 : i32
    %c0_i32_1 = arith.constant 0 : i32
    return %arg1, %c0_i32, %c0_i32_0 : i32, i32, i32
  }
  func.func @transform_12(%arg0: i32, %arg1: i32) -> (i32, i32, i32) {
    %c0_i32 = arith.constant 0 : i32
    %c0_i32_0 = arith.constant 0 : i32
    %c0_i32_1 = arith.constant 0 : i32
    return %arg1, %c0_i32, %c0_i32_0 : i32, i32, i32
  }
  func.func @transform_13(%arg0: i32, %arg1: i32) -> (i32, i32, i32) {
    %c0_i32 = arith.constant 0 : i32
    %c0_i32_0 = arith.constant 0 : i32
    %c0_i32_1 = arith.constant 0 : i32
    return %arg1, %c0_i32, %c0_i32_0 : i32, i32, i32
  }
  func.func @transform_14(%arg0: i32, %arg1: i32) -> (i32, i32, i32) {
    %c0_i32 = arith.constant 0 : i32
    %c0_i32_0 = arith.constant 0 : i32
    %c0_i32_1 = arith.constant 0 : i32
    return %arg1, %c0_i32, %c0_i32_0 : i32, i32, i32
  }
  func.func @transform_15(%arg0: i32, %arg1: i32) -> (i32, i32) {
    %c0_i32 = arith.constant 0 : i32
    %c0_i32_0 = arith.constant 0 : i32
    %c0_i32_1 = arith.constant 0 : i32
    return %c0_i32, %c0_i32_0 : i32, i32
  }
  func.func @transform_16(%arg0: i32, %arg1: i32) -> (i32, i32) {
    %c0_i32 = arith.constant 0 : i32
    %c0_i32_0 = arith.constant 0 : i32
    %c0_i32_1 = arith.constant 0 : i32
    return %c0_i32, %c0_i32_0 : i32, i32
  }
  func.func @transform_17(%arg0: i32, %arg1: i32) -> (i32, i32) {
    %c0_i32 = arith.constant 0 : i32
    %c0_i32_0 = arith.constant 0 : i32
    %c0_i32_1 = arith.constant 0 : i32
    return %c0_i32, %c0_i32_0 : i32, i32
  }
  func.func @transform_18(%arg0: i32, %arg1: i32) -> (i32, i32) {
    %c0_i32 = arith.constant 0 : i32
    %c0_i32_0 = arith.constant 0 : i32
    %c0_i32_1 = arith.constant 0 : i32
    return %c0_i32, %c0_i32_0 : i32, i32
  }
  func.func @transform_19(%arg0: i32, %arg1: i32) -> (i32, i32, i32) {
    %c0_i32 = arith.constant 0 : i32
    %c0_i32_0 = arith.constant 0 : i32
    %c0_i32_1 = arith.constant 0 : i32
    return %arg0, %c0_i32, %c0_i32_0 : i32, i32, i32
  }
}

</mosaic_0001>

<llo_original>
// kernel: tpu_custom_call.1
$region0: #{tpu_custom_call.1}
  #allocation0 [shape = 'u32[]', space=smem, size = 0x4, offset = 0x4, fixed_abs, tag = 'smem constant byte address 0x4 - core index']
  #allocation1 [shape = 'u32[144,128]{1,0:T(1,128)}', space=vmem, size = 0x12000, scoped, tag = 'internal scratch']
  #allocation2 [shape = 'f32[8,32]{1,0:T(8,128)}', space=vmem, size = 0x1000, scoped, tag = 'scratch operand']
  %s0 = inlined_call_operand.hbm [shape: f32[16,32], index: 0, kind: input, shape index: {}]
  %s1 = inlined_call_operand.hbm [shape: f32[1,32], index: 1, kind: input, shape index: {}]
  %s2 = inlined_call_operand.hbm [shape: f32[1,32], index: 2, kind: input, shape index: {}]
  %s3 = inlined_call_operand.vmem [shape: bf16[2,32,96], index: 3, kind: input, shape index: {}]
  %s4 = inlined_call_operand.hbm [shape: f32[2,1,96], index: 4, kind: input, shape index: {}]
  %s5 = inlined_call_operand.vmem [shape: bf16[2,32,32], index: 5, kind: input, shape index: {}]
  %s6 = inlined_call_operand.hbm [shape: f32[2,1,32], index: 6, kind: input, shape index: {}]
  %s7 = inlined_call_operand.hbm [shape: f32[2,1,32], index: 7, kind: input, shape index: {}]
  %s8 = inlined_call_operand.hbm [shape: f32[2,1,32], index: 8, kind: input, shape index: {}]
  %s9 = inlined_call_operand.vmem [shape: bf16[2,32,64], index: 9, kind: input, shape index: {}]
  %s10 = inlined_call_operand.hbm [shape: f32[2,1,64], index: 10, kind: input, shape index: {}]
  %s11 = inlined_call_operand.vmem [shape: bf16[2,64,32], index: 11, kind: input, shape index: {}]
  %s12 = inlined_call_operand.hbm [shape: f32[2,1,32], index: 12, kind: input, shape index: {}]
  %s13 = inlined_call_operand.hbm [shape: f32[2,1,32], index: 13, kind: input, shape index: {}]
  %s14 = inlined_call_operand.hbm [shape: f32[2,1,32], index: 14, kind: input, shape index: {}]
  %s15 = inlined_call_operand.vmem [shape: bf16[32,32], index: 15, kind: input, shape index: {}]
  %s16 = inlined_call_operand.hbm [shape: f32[1,32], index: 16, kind: input, shape index: {}]
  %s17 = inlined_call_operand.vmem [shape: bf16[32,128], index: 17, kind: input, shape index: {}]
  %s18 = inlined_call_operand.vmem [shape: f32[1,128], index: 18, kind: input, shape index: {}]
  %s19 = inlined_call_operand.hbm [shape: f32[2,1,128], index: 19, kind: output, shape index: {}]
  %s20 = sld [smem:[#allocation0]]
  $region165: #{tpu_custom_call.1} parent=0
    _
  %s22 = ssub.s32 1, %s20
  %s23 = scalar_select 0, %s22, %s20
  $region1: #{tpu_custom_call.1} parent=0
    #allocation3 [shape = 'u8[4096]{0}', space=vmem, size = 0x1000, scoped, tag = 'input window, operand 0, single buffered']
    #allocation4 [shape = 's32[2]{0}', space=sflag, size = 0x8, scoped, tag = 'scoped memory for tpu_custom_call.1']
    #allocation5 [shape = 's32[2]{0}', space=sflag, size = 0x8, scoped, tag = 'scoped memory for tpu_custom_call.1']
    #allocation6 [shape = 'u8[512]{0}', space=vmem, size = 0x400, scoped, tag = 'input window, operand 1, single buffered']
    #allocation7 [shape = 's32[1]{0}', space=sflag, size = 0x4, scoped, tag = 'scoped memory for tpu_custom_call.1']
    #allocation8 [shape = 'u8[512]{0}', space=vmem, size = 0x400, scoped, tag = 'input window, operand 2, single buffered']
    #allocation9 [shape = 'u8[1024]{0}', space=vmem, size = 0x400, scoped, tag = 'input window, operand 4']
    #allocation10 [shape = 's32[2]{0}', space=sflag, size = 0x8, scoped, tag = 'scoped memory for tpu_custom_call.1']
    #allocation11 [shape = 'u8[1024]{0}', space=vmem, size = 0x400, scoped, tag = 'input window, operand 6']
    #allocation12 [shape = 'u8[1024]{0}', space=vmem, size = 0x400, scoped, tag = 'input window, operand 7']
    #allocation13 [shape = 's32[2]{0}', space=sflag, size = 0x8, scoped, tag = 'scoped memory for tpu_custom_call.1']
    #allocation14 [shape = 'u8[1024]{0}', space=vmem, size = 0x400, scoped, tag = 'input window, operand 8']
    #allocation15 [shape = 'u8[1024]{0}', space=vmem, size = 0x400, scoped, tag = 'input window, operand 10']
    #allocation16 [shape = 's32[2]{0}', space=sflag, size = 0x8, scoped, tag = 'scoped memory for tpu_custom_call.1']
    #allocation17 [shape = 'u8[1024]{0}', space=vmem, size = 0x400, scoped, tag = 'input window, operand 12']
    #allocation18 [shape = 'u8[1024]{0}', space=vmem, size = 0x400, scoped, tag = 'input window, operand 13']
    #allocation19 [shape = 's32[2]{0}', space=sflag, size = 0x8, scoped, tag = 'scoped memory for tpu_custom_call.1']
    #allocation20 [shape = 'u8[1024]{0}', space=vmem, size = 0x400, scoped, tag = 'input window, operand 14']
    #allocation21 [shape = 'u8[512]{0}', space=vmem, size = 0x400, scoped, tag = 'input window, operand 16, single buffered']
    #allocation22 [shape = 's32[1]{0}', space=sflag, size = 0x4, scoped, tag = 'scoped memory for tpu_custom_call.1']
    #allocation23 [shape = 'u8[1024]{0}', space=vmem, size = 0x400, scoped, tag = 'output window, operand 0']
    %24 = vsyncpa [#allocation4], 0
    %25 = vsyncpa [#allocation7], 0
    %26 = vsyncpa [#allocation10], 0
    %s27 = scalar_lea.sflag [#allocation10], 1
    %28 = vsyncpa %s27, 0
    %29 = vsyncpa [#allocation13], 0
    %s30 = scalar_lea.sflag [#allocation13], 1
    %31 = vsyncpa %s30, 0
    %32 = vsyncpa [#allocation16], 0
    %s33 = scalar_lea.sflag [#allocation16], 1
    %34 = vsyncpa %s33, 0
    %35 = vsyncpa [#allocation19], 0
    %s36 = scalar_lea.sflag [#allocation19], 1
    %37 = vsyncpa %s36, 0
    %38 = vsyncpa [#allocation22], 0
    %39 = vsyncpa [#allocation5], 0
    %s40 = scalar_lea.sflag [#allocation5], 1
    %41 = vsyncpa %s40, 0
    loop: start=0, step=1, limit=6
    $region2: #{tpu_custom_call.1} parent=1 // loop_pre_header
      _
    $region3: #{tpu_custom_call.1} parent=1 // loop_header
      %s43 = sphi 0, %s47
      %p44 = scmp.ge.s32.totalorder %s43, 6
      %s50 = sphi 0, %s62
      %s51 = sphi 0, %s58
      %s52 = sphi 0, %s50
      %s53 = sphi 0, %s51
      %s54 = sphi 0, %s52
      %s55 = sphi 0, %s53
      %s65 = sphi 0, %s67
      %s68 = sphi 0, %s65
      %s69 = sphi 0, %s68
      %s85 = sphi 0, %s69
      %s89 = sphi 0, %s89
      %s91 = sphi 0, %s89
      %s92 = sphi 0, %s91
      %s106 = sphi 0, %s92
      %s110 = sphi 0, %s110
      %s112 = sphi 0, %s110
      %s113 = sphi 0, %s112
      %s127 = sphi 0, %s113
      %s133 = sphi 0, %s135
      %s136 = sphi 0, %s133
      %s137 = sphi 0, %s136
      %s153 = sphi 0, %s137
      %s159 = sphi 0, %s161
      %s162 = sphi 0, %s159
      %s163 = sphi 0, %s162
      %s179 = sphi 0, %s163
      %s185 = sphi 0, %s187
      %s188 = sphi 0, %s185
      %s189 = sphi 0, %s188
      %s205 = sphi 0, %s189
      %s211 = sphi 0, %s213
      %s214 = sphi 0, %s211
      %s215 = sphi 0, %s214
      %s231 = sphi 0, %s215
      %s237 = sphi 0, %s239
      %s240 = sphi 0, %s237
      %s241 = sphi 0, %s240
      %s257 = sphi 0, %s241
      %s263 = sphi 0, %s265
      %s266 = sphi 0, %s263
      %s267 = sphi 0, %s266
      %s283 = sphi 0, %s267
      %s289 = sphi 0, %s291
      %s292 = sphi 0, %s289
      %s293 = sphi 0, %s292
      %s309 = sphi 0, %s293
      %s315 = sphi 0, %s317
      %s318 = sphi 0, %s315
      %s319 = sphi 0, %s318
      %s335 = sphi 0, %s319
      %s341 = sphi 0, %s343
      %s344 = sphi 0, %s341
      %s345 = sphi 0, %s344
      %s361 = sphi 0, %s345
      %s367 = sphi 0, %s369
      %s370 = sphi 0, %s367
      %s371 = sphi 0, %s370
      %s387 = sphi 0, %s371
      %s393 = sphi 0, %s395
      %s396 = sphi 0, %s393
      %s397 = sphi 0, %s396
      %s413 = sphi 0, %s397
      %s419 = sphi 0, %s421
      %s422 = sphi 0, %s419
      %s423 = sphi 0, %s422
      %s439 = sphi 0, %s423
      %s443 = sphi 0, %s443
      %s445 = sphi 0, %s443
      %s446 = sphi 0, %s445
      %s460 = sphi 0, %s446
      %s464 = sphi 0, %s464
      %s466 = sphi 0, %s464
      %s467 = sphi 0, %s466
      %s481 = sphi 0, %s467
      %s485 = sphi 0, %s485
      %s487 = sphi 0, %s485
      %s488 = sphi 0, %s487
      %s502 = sphi 0, %s488
      %s506 = sphi 0, %s506
      %s508 = sphi 0, %s506
      %s509 = sphi 0, %s508
      %s523 = sphi 0, %s509
      %s529 = sphi 0, %s531
      %s532 = sphi 0, %s529
      %s533 = sphi 0, %s532
      %s549 = sphi 0, %s533
    $region4: #{tpu_custom_call.1} parent=1 // loop_header_branch
      %46 = sbr.rel (%p44) target = $region8
    $region5: #{tpu_custom_call.1} parent=1 // loop_body
      %s48 = ssub.s32 %s43, 1
      %s49 = ssub.s32 %s43, 2
      %s56 = sadd.s32 1, %s51
      %p57 = scmp.ge.s32.totalorder %s56, 2
      %s58 = scalar_select %p57, 0, %s56
      %s59 = sadd.s32 1, %s50
      %s60 = scalar_select %p57, %s59, %s50
      %p61 = scmp.ge.s32.totalorder %s60, 2
      %s62 = scalar_select %p61, 0, %s60
      %s63 = ssub.s32 %s50, %s62
      %p64 = scmp.eq.s32.totalorder %s63, 0
      %s66 = sadd.s32 %s65, 1
      %s67 = scalar_select %p64, %s65, %s66
      %p70 = pneg %p64
      %p71 = scmp.eq.s32.totalorder %s43, 3
      %p72 = por %p70, %p71
      %p73 = scmp.ne.s32.totalorder %s65, %s68
      %p74 = scmp.eq.s32.totalorder %s43, 0
      %p75 = por %p73, %p74
      %p76 = scmp.ne.s32.totalorder %s65, %s68
      %p77 = scmp.eq.s32.totalorder %s48, 3
      %p78 = por %p76, %p77
      %p79 = scmp.ne.s32.totalorder %s68, %s69
      %p80 = scmp.eq.s32.totalorder %s48, 0
      %p81 = por %p79, %p80
      %p82 = scmp.ne.s32.totalorder %s68, %s69
      %p83 = scmp.eq.s32.totalorder %s49, 3
      %p84 = por %p82, %p83
      %p86 = scmp.ne.s32.totalorder %s69, %s85
      %p87 = scmp.eq.s32.totalorder %s49, 0
      %p88 = por %p86, %p87
      %s90 = sadd.s32 %s89, 1
      %p93 = scmp.eq.s32.totalorder %s43, 3
      %p94 = scmp.ne.s32.totalorder %s89, %s91
      %p95 = scmp.eq.s32.totalorder %s43, 0
      %p96 = por %p94, %p95
      %p97 = scmp.ne.s32.totalorder %s89, %s91
      %p98 = scmp.eq.s32.totalorder %s48, 3
      %p99 = por %p97, %p98
      %p100 = scmp.ne.s32.totalorder %s91, %s92
      %p101 = scmp.eq.s32.totalorder %s48, 0
      %p102 = por %p100, %p101
      %p103 = scmp.ne.s32.totalorder %s91, %s92
      %p104 = scmp.eq.s32.totalorder %s49, 3
      %p105 = por %p103, %p104
      %p107 = scmp.ne.s32.totalorder %s92, %s106
      %p108 = scmp.eq.s32.totalorder %s49, 0
      %p109 = por %p107, %p108
      %s111 = sadd.s32 %s110, 1
      %p114 = scmp.eq.s32.totalorder %s43, 3
      %p115 = scmp.ne.s32.totalorder %s110, %s112
      %p116 = scmp.eq.s32.totalorder %s43, 0
      %p117 = por %p115, %p116
      %p118 = scmp.ne.s32.totalorder %s110, %s112
      %p119 = scmp.eq.s32.totalorder %s48, 3
      %p120 = por %p118, %p119
      %p121 = scmp.ne.s32.totalorder %s112, %s113
      %p122 = scmp.eq.s32.totalorder %s48, 0
      %p123 = por %p121, %p122
      %p124 = scmp.ne.s32.totalorder %s112, %s113
      %p125 = scmp.eq.s32.totalorder %s49, 3
      %p126 = por %p124, %p125
      %p128 = scmp.ne.s32.totalorder %s113, %s127
      %p129 = scmp.eq.s32.totalorder %s49, 0
      %p130 = por %p128, %p129
      %s131 = ssub.s32 %s51, %s58
      %p132 = scmp.eq.s32.totalorder %s131, 0
      %s134 = sadd.s32 %s133, 1
      %s135 = scalar_select %p132, %s133, %s134
      %p138 = pneg %p132
      %p139 = scmp.eq.s32.totalorder %s43, 3
      %p140 = por %p138, %p139
      %p141 = scmp.ne.s32.totalorder %s133, %s136
      %p142 = scmp.eq.s32.totalorder %s43, 0
      %p143 = por %p141, %p142
      %p144 = scmp.ne.s32.totalorder %s133, %s136
      %p145 = scmp.eq.s32.totalorder %s48, 3
      %p146 = por %p144, %p145
      %p147 = scmp.ne.s32.totalorder %s136, %s137
      %p148 = scmp.eq.s32.totalorder %s48, 0
      %p149 = por %p147, %p148
      %p150 = scmp.ne.s32.totalorder %s136, %s137
      %p151 = scmp.eq.s32.totalorder %s49, 3
      %p152 = por %p150, %p151
      %p154 = scmp.ne.s32.totalorder %s137, %s153
      %p155 = scmp.eq.s32.totalorder %s49, 0
      %p156 = por %p154, %p155
      %s157 = ssub.s32 %s51, %s58
      %p158 = scmp.eq.s32.totalorder %s157, 0
      %s160 = sadd.s32 %s159, 1
      %s161 = scalar_select %p158, %s159, %s160
      %p164 = pneg %p158
      %p165 = scmp.eq.s32.totalorder %s43, 3
      %p166 = por %p164, %p165
      %p167 = scmp.ne.s32.totalorder %s159, %s162
      %p168 = scmp.eq.s32.totalorder %s43, 0
      %p169 = por %p167, %p168
      %p170 = scmp.ne.s32.totalorder %s159, %s162
      %p171 = scmp.eq.s32.totalorder %s48, 3
      %p172 = por %p170, %p171
      %p173 = scmp.ne.s32.totalorder %s162, %s163
      %p174 = scmp.eq.s32.totalorder %s48, 0
      %p175 = por %p173, %p174
      %p176 = scmp.ne.s32.totalorder %s162, %s163
      %p177 = scmp.eq.s32.totalorder %s49, 3
      %p178 = por %p176, %p177
      %p180 = scmp.ne.s32.totalorder %s163, %s179
      %p181 = scmp.eq.s32.totalorder %s49, 0
      %p182 = por %p180, %p181
      %s183 = ssub.s32 %s51, %s58
      %p184 = scmp.eq.s32.totalorder %s183, 0
      %s186 = sadd.s32 %s185, 1
      %s187 = scalar_select %p184, %s185, %s186
      %p190 = pneg %p184
      %p191 = scmp.eq.s32.totalorder %s43, 3
      %p192 = por %p190, %p191
      %p193 = scmp.ne.s32.totalorder %s185, %s188
      %p194 = scmp.eq.s32.totalorder %s43, 0
      %p195 = por %p193, %p194
      %p196 = scmp.ne.s32.totalorder %s185, %s188
      %p197 = scmp.eq.s32.totalorder %s48, 3
      %p198 = por %p196, %p197
      %p199 = scmp.ne.s32.totalorder %s188, %s189
      %p200 = scmp.eq.s32.totalorder %s48, 0
      %p201 = por %p199, %p200
      %p202 = scmp.ne.s32.totalorder %s188, %s189
      %p203 = scmp.eq.s32.totalorder %s49, 3
      %p204 = por %p202, %p203
      %p206 = scmp.ne.s32.totalorder %s189, %s205
      %p207 = scmp.eq.s32.totalorder %s49, 0
      %p208 = por %p206, %p207
      %s209 = ssub.s32 %s51, %s58
      %p210 = scmp.eq.s32.totalorder %s209, 0
      %s212 = sadd.s32 %s211, 1
      %s213 = scalar_select %p210, %s211, %s212
      %p216 = pneg %p210
      %p217 = scmp.eq.s32.totalorder %s43, 3
      %p218 = por %p216, %p217
      %p219 = scmp.ne.s32.totalorder %s211, %s214
      %p220 = scmp.eq.s32.totalorder %s43, 0
      %p221 = por %p219, %p220
      %p222 = scmp.ne.s32.totalorder %s211, %s214
      %p223 = scmp.eq.s32.totalorder %s48, 3
      %p224 = por %p222, %p223
      %p225 = scmp.ne.s32.totalorder %s214, %s215
      %p226 = scmp.eq.s32.totalorder %s48, 0
      %p227 = por %p225, %p226
      %p228 = scmp.ne.s32.totalorder %s214, %s215
      %p229 = scmp.eq.s32.totalorder %s49, 3
      %p230 = por %p228, %p229
      %p232 = scmp.ne.s32.totalorder %s215, %s231
      %p233 = scmp.eq.s32.totalorder %s49, 0
      %p234 = por %p232, %p233
      %s235 = ssub.s32 %s51, %s58
      %p236 = scmp.eq.s32.totalorder %s235, 0
      %s238 = sadd.s32 %s237, 1
      %s239 = scalar_select %p236, %s237, %s238
      %p242 = pneg %p236
      %p243 = scmp.eq.s32.totalorder %s43, 3
      %p244 = por %p242, %p243
      %p245 = scmp.ne.s32.totalorder %s237, %s240
      %p246 = scmp.eq.s32.totalorder %s43, 0
      %p247 = por %p245, %p246
      %p248 = scmp.ne.s32.totalorder %s237, %s240
      %p249 = scmp.eq.s32.totalorder %s48, 3
      %p250 = por %p248, %p249
      %p251 = scmp.ne.s32.totalorder %s240, %s241
      %p252 = scmp.eq.s32.totalorder %s48, 0
      %p253 = por %p251, %p252
      %p254 = scmp.ne.s32.totalorder %s240, %s241
      %p255 = scmp.eq.s32.totalorder %s49, 3
      %p256 = por %p254, %p255
      %p258 = scmp.ne.s32.totalorder %s241, %s257
      %p259 = scmp.eq.s32.totalorder %s49, 0
      %p260 = por %p258, %p259
      %s261 = ssub.s32 %s51, %s58
      %p262 = scmp.eq.s32.totalorder %s261, 0
      %s264 = sadd.s32 %s263, 1
      %s265 = scalar_select %p262, %s263, %s264
      %p268 = pneg %p262
      %p269 = scmp.eq.s32.totalorder %s43, 3
      %p270 = por %p268, %p269
      %p271 = scmp.ne.s32.totalorder %s263, %s266
      %p272 = scmp.eq.s32.totalorder %s43, 0
      %p273 = por %p271, %p272
      %p274 = scmp.ne.s32.totalorder %s263, %s266
      %p275 = scmp.eq.s32.totalorder %s48, 3
      %p276 = por %p274, %p275
      %p277 = scmp.ne.s32.totalorder %s266, %s267
      %p278 = scmp.eq.s32.totalorder %s48, 0
      %p279 = por %p277, %p278
      %p280 = scmp.ne.s32.totalorder %s266, %s267
      %p281 = scmp.eq.s32.totalorder %s49, 3
      %p282 = por %p280, %p281
      %p284 = scmp.ne.s32.totalorder %s267, %s283
      %p285 = scmp.eq.s32.totalorder %s49, 0
      %p286 = por %p284, %p285
      %s287 = ssub.s32 %s51, %s58
      %p288 = scmp.eq.s32.totalorder %s287, 0
      %s290 = sadd.s32 %s289, 1
      %s291 = scalar_select %p288, %s289, %s290
      %p294 = pneg %p288
      %p295 = scmp.eq.s32.totalorder %s43, 3
      %p296 = por %p294, %p295
      %p297 = scmp.ne.s32.totalorder %s289, %s292
      %p298 = scmp.eq.s32.totalorder %s43, 0
      %p299 = por %p297, %p298
      %p300 = scmp.ne.s32.totalorder %s289, %s292
      %p301 = scmp.eq.s32.totalorder %s48, 3
      %p302 = por %p300, %p301
      %p303 = scmp.ne.s32.totalorder %s292, %s293
      %p304 = scmp.eq.s32.totalorder %s48, 0
      %p305 = por %p303, %p304
      %p306 = scmp.ne.s32.totalorder %s292, %s293
      %p307 = scmp.eq.s32.totalorder %s49, 3
      %p308 = por %p306, %p307
      %p310 = scmp.ne.s32.totalorder %s293, %s309
      %p311 = scmp.eq.s32.totalorder %s49, 0
      %p312 = por %p310, %p311
      %s313 = ssub.s32 %s51, %s58
      %p314 = scmp.eq.s32.totalorder %s313, 0
      %s316 = sadd.s32 %s315, 1
      %s317 = scalar_select %p314, %s315, %s316
      %p320 = pneg %p314
      %p321 = scmp.eq.s32.totalorder %s43, 3
      %p322 = por %p320, %p321
      %p323 = scmp.ne.s32.totalorder %s315, %s318
      %p324 = scmp.eq.s32.totalorder %s43, 0
      %p325 = por %p323, %p324
      %p326 = scmp.ne.s32.totalorder %s315, %s318
      %p327 = scmp.eq.s32.totalorder %s48, 3
      %p328 = por %p326, %p327
      %p329 = scmp.ne.s32.totalorder %s318, %s319
      %p330 = scmp.eq.s32.totalorder %s48, 0
      %p331 = por %p329, %p330
      %p332 = scmp.ne.s32.totalorder %s318, %s319
      %p333 = scmp.eq.s32.totalorder %s49, 3
      %p334 = por %p332, %p333
      %p336 = scmp.ne.s32.totalorder %s319, %s335
      %p337 = scmp.eq.s32.totalorder %s49, 0
      %p338 = por %p336, %p337
      %s339 = ssub.s32 %s51, %s58
      %p340 = scmp.eq.s32.totalorder %s339, 0
      %s342 = sadd.s32 %s341, 1
      %s343 = scalar_select %p340, %s341, %s342
      %p346 = pneg %p340
      %p347 = scmp.eq.s32.totalorder %s43, 3
      %p348 = por %p346, %p347
      %p349 = scmp.ne.s32.totalorder %s341, %s344
      %p350 = scmp.eq.s32.totalorder %s43, 0
      %p351 = por %p349, %p350
      %p352 = scmp.ne.s32.totalorder %s341, %s344
      %p353 = scmp.eq.s32.totalorder %s48, 3
      %p354 = por %p352, %p353
      %p355 = scmp.ne.s32.totalorder %s344, %s345
      %p356 = scmp.eq.s32.totalorder %s48, 0
      %p357 = por %p355, %p356
      %p358 = scmp.ne.s32.totalorder %s344, %s345
      %p359 = scmp.eq.s32.totalorder %s49, 3
      %p360 = por %p358, %p359
      %p362 = scmp.ne.s32.totalorder %s345, %s361
      %p363 = scmp.eq.s32.totalorder %s49, 0
      %p364 = por %p362, %p363
      %s365 = ssub.s32 %s51, %s58
      %p366 = scmp.eq.s32.totalorder %s365, 0
      %s368 = sadd.s32 %s367, 1
      %s369 = scalar_select %p366, %s367, %s368
      %p372 = pneg %p366
      %p373 = scmp.eq.s32.totalorder %s43, 3
      %p374 = por %p372, %p373
      %p375 = scmp.ne.s32.totalorder %s367, %s370
      %p376 = scmp.eq.s32.totalorder %s43, 0
      %p377 = por %p375, %p376
      %p378 = scmp.ne.s32.totalorder %s367, %s370
      %p379 = scmp.eq.s32.totalorder %s48, 3
      %p380 = por %p378, %p379
      %p381 = scmp.ne.s32.totalorder %s370, %s371
      %p382 = scmp.eq.s32.totalorder %s48, 0
      %p383 = por %p381, %p382
      %p384 = scmp.ne.s32.totalorder %s370, %s371
      %p385 = scmp.eq.s32.totalorder %s49, 3
      %p386 = por %p384, %p385
      %p388 = scmp.ne.s32.totalorder %s371, %s387
      %p389 = scmp.eq.s32.totalorder %s49, 0
      %p390 = por %p388, %p389
      %s391 = ssub.s32 %s51, %s58
      %p392 = scmp.eq.s32.totalorder %s391, 0
      %s394 = sadd.s32 %s393, 1
      %s395 = scalar_select %p392, %s393, %s394
      %p398 = pneg %p392
      %p399 = scmp.eq.s32.totalorder %s43, 3
      %p400 = por %p398, %p399
      %p401 = scmp.ne.s32.totalorder %s393, %s396
      %p402 = scmp.eq.s32.totalorder %s43, 0
      %p403 = por %p401, %p402
      %p404 = scmp.ne.s32.totalorder %s393, %s396
      %p405 = scmp.eq.s32.totalorder %s48, 3
      %p406 = por %p404, %p405
      %p407 = scmp.ne.s32.totalorder %s396, %s397
      %p408 = scmp.eq.s32.totalorder %s48, 0
      %p409 = por %p407, %p408
      %p410 = scmp.ne.s32.totalorder %s396, %s397
      %p411 = scmp.eq.s32.totalorder %s49, 3
      %p412 = por %p410, %p411
      %p414 = scmp.ne.s32.totalorder %s397, %s413
      %p415 = scmp.eq.s32.totalorder %s49, 0
      %p416 = por %p414, %p415
      %s417 = ssub.s32 %s51, %s58
      %p418 = scmp.eq.s32.totalorder %s417, 0
      %s420 = sadd.s32 %s419, 1
      %s421 = scalar_select %p418, %s419, %s420
      %p424 = pneg %p418
      %p425 = scmp.eq.s32.totalorder %s43, 3
      %p426 = por %p424, %p425
      %p427 = scmp.ne.s32.totalorder %s419, %s422
      %p428 = scmp.eq.s32.totalorder %s43, 0
      %p429 = por %p427, %p428
      %p430 = scmp.ne.s32.totalorder %s419, %s422
      %p431 = scmp.eq.s32.totalorder %s48, 3
      %p432 = por %p430, %p431
      %p433 = scmp.ne.s32.totalorder %s422, %s423
      %p434 = scmp.eq.s32.totalorder %s48, 0
      %p435 = por %p433, %p434
      %p436 = scmp.ne.s32.totalorder %s422, %s423
      %p437 = scmp.eq.s32.totalorder %s49, 3
      %p438 = por %p436, %p437
      %p440 = scmp.ne.s32.totalorder %s423, %s439
      %p441 = scmp.eq.s32.totalorder %s49, 0
      %p442 = por %p440, %p441
      %s444 = sadd.s32 %s443, 1
      %p447 = scmp.eq.s32.totalorder %s43, 3
      %p448 = scmp.ne.s32.totalorder %s443, %s445
      %p449 = scmp.eq.s32.totalorder %s43, 0
      %p450 = por %p448, %p449
      %p451 = scmp.ne.s32.totalorder %s443, %s445
      %p452 = scmp.eq.s32.totalorder %s48, 3
      %p453 = por %p451, %p452
      %p454 = scmp.ne.s32.totalorder %s445, %s446
      %p455 = scmp.eq.s32.totalorder %s48, 0
      %p456 = por %p454, %p455
      %p457 = scmp.ne.s32.totalorder %s445, %s446
      %p458 = scmp.eq.s32.totalorder %s49, 3
      %p459 = por %p457, %p458
      %p461 = scmp.ne.s32.totalorder %s446, %s460
      %p462 = scmp.eq.s32.totalorder %s49, 0
      %p463 = por %p461, %p462
      %s465 = sadd.s32 %s464, 1
      %p468 = scmp.eq.s32.totalorder %s43, 3
      %p469 = scmp.ne.s32.totalorder %s464, %s466
      %p470 = scmp.eq.s32.totalorder %s43, 0
      %p471 = por %p469, %p470
      %p472 = scmp.ne.s32.totalorder %s464, %s466
      %p473 = scmp.eq.s32.totalorder %s48, 3
      %p474 = por %p472, %p473
      %p475 = scmp.ne.s32.totalorder %s466, %s467
      %p476 = scmp.eq.s32.totalorder %s48, 0
      %p477 = por %p475, %p476
      %p478 = scmp.ne.s32.totalorder %s466, %s467
      %p479 = scmp.eq.s32.totalorder %s49, 3
      %p480 = por %p478, %p479
      %p482 = scmp.ne.s32.totalorder %s467, %s481
      %p483 = scmp.eq.s32.totalorder %s49, 0
      %p484 = por %p482, %p483
      %s486 = sadd.s32 %s485, 1
      %p489 = scmp.eq.s32.totalorder %s43, 3
      %p490 = scmp.ne.s32.totalorder %s485, %s487
      %p491 = scmp.eq.s32.totalorder %s43, 0
      %p492 = por %p490, %p491
      %p493 = scmp.ne.s32.totalorder %s485, %s487
      %p494 = scmp.eq.s32.totalorder %s48, 3
      %p495 = por %p493, %p494
      %p496 = scmp.ne.s32.totalorder %s487, %s488
      %p497 = scmp.eq.s32.totalorder %s48, 0
      %p498 = por %p496, %p497
      %p499 = scmp.ne.s32.totalorder %s487, %s488
      %p500 = scmp.eq.s32.totalorder %s49, 3
      %p501 = por %p499, %p500
      %p503 = scmp.ne.s32.totalorder %s488, %s502
      %p504 = scmp.eq.s32.totalorder %s49, 0
      %p505 = por %p503, %p504
      %s507 = sadd.s32 %s506, 1
      %p510 = scmp.eq.s32.totalorder %s43, 3
      %p511 = scmp.ne.s32.totalorder %s506, %s508
      %p512 = scmp.eq.s32.totalorder %s43, 0
      %p513 = por %p511, %p512
      %p514 = scmp.ne.s32.totalorder %s506, %s508
      %p515 = scmp.eq.s32.totalorder %s48, 3
      %p516 = por %p514, %p515
      %p517 = scmp.ne.s32.totalorder %s508, %s509
      %p518 = scmp.eq.s32.totalorder %s48, 0
      %p519 = por %p517, %p518
      %p520 = scmp.ne.s32.totalorder %s508, %s509
      %p521 = scmp.eq.s32.totalorder %s49, 3
      %p522 = por %p520, %p521
      %p524 = scmp.ne.s32.totalorder %s509, %s523
      %p525 = scmp.eq.s32.totalorder %s49, 0
      %p526 = por %p524, %p525
      %s527 = ssub.s32 %s50, %s62
      %p528 = scmp.eq.s32.totalorder %s527, 0
      %s530 = sadd.s32 %s529, 1
      %s531 = scalar_select %p528, %s529, %s530
      %p534 = pneg %p528
      %p535 = scmp.eq.s32.totalorder %s43, 3
      %p536 = por %p534, %p535
      %p537 = scmp.ne.s32.totalorder %s529, %s532
      %p538 = scmp.eq.s32.totalorder %s43, 0
      %p539 = por %p537, %p538
      %p540 = scmp.ne.s32.totalorder %s529, %s532
      %p541 = scmp.eq.s32.totalorder %s48, 3
      %p542 = por %p540, %p541
      %p543 = scmp.ne.s32.totalorder %s532, %s533
      %p544 = scmp.eq.s32.totalorder %s48, 0
      %p545 = por %p543, %p544
      %p546 = scmp.ne.s32.totalorder %s532, %s533
      %p547 = scmp.eq.s32.totalorder %s49, 3
      %p548 = por %p546, %p547
      %p550 = scmp.ne.s32.totalorder %s533, %s549
      %p551 = scmp.eq.s32.totalorder %s49, 0
      %p552 = por %p550, %p551
      %p553 = scmp.le.s32.totalorder 1, %s43
      %p554 = scmp.lt.s32.totalorder %s43, 5
      %p555 = pnand %p553, %p554
      %p556 = pneg %p555
      // Predicated region
      $region9: #{tpu_custom_call.1} parent=5 // pred_check
        _
      $region10: #{tpu_custom_call.1} parent=5 // pred_check_branch
        %558 = sbr.rel (%p555) target = $region12
      $region11: #{tpu_custom_call.1} parent=5 // pred_region
        %s559 = ssub.s32 %s43, 1
        // Predicated region
        $region13: #{tpu_custom_call.1} parent=11 // pred_check
          %p560 = pneg %p81
        $region14: #{tpu_custom_call.1} parent=11 // pred_check_branch
          %562 = sbr.rel (%p560) target = $region16
        $region15: #{tpu_custom_call.1} parent=11 // pred_region
          %s564 = ssub.s32 128, 128
          %565 = vsyncadd [#allocation4], %s564
          %s566 = smul.addr %s52, 128
          %s567 = scalar_lea.hbm %s0, %s566
          %s569 = sshll.u32 [#allocation3], 4
          %s570 = int_to_ptr.vmem [resolvable:$true] %s569
          %572 = dma.hbm_to_vmem [thread:$0]  %s567, 128, %s570, [#allocation4]
        $region16: #{tpu_custom_call.1} parent=11 // pred_fallthru
          _
        // Predicated region
        $region17: #{tpu_custom_call.1} parent=11 // pred_check
          %p573 = pneg %p102
        $region18: #{tpu_custom_call.1} parent=11 // pred_check_branch
          %575 = sbr.rel (%p573) target = $region20
        $region19: #{tpu_custom_call.1} parent=11 // pred_region
          %s577 = ssub.s32 16, 16
          %578 = vsyncadd [#allocation7], %s577
          %s580 = sshll.u32 [#allocation6], 4
          %s581 = int_to_ptr.vmem [resolvable:$true] %s580
          %583 = dma.hbm_to_vmem [thread:$0]  %s1, 16, %s581, [#allocation7]
        $region20: #{tpu_custom_call.1} parent=11 // pred_fallthru
          _
        // Predicated region
        $region21: #{tpu_custom_call.1} parent=11 // pred_check
          %p584 = pneg %p123
        $region22: #{tpu_custom_call.1} parent=11 // pred_check_branch
          %586 = sbr.rel (%p584) target = $region24
        $region23: #{tpu_custom_call.1} parent=11 // pred_region
          %s588 = ssub.s32 16, 16
          %589 = vsyncadd [#allocation7], %s588
          %s591 = sshll.u32 [#allocation8], 4
          %s592 = int_to_ptr.vmem [resolvable:$true] %s591
          %594 = dma.hbm_to_vmem [thread:$0]  %s2, 16, %s592, [#allocation7]
        $region24: #{tpu_custom_call.1} parent=11 // pred_fallthru
          _
        // Predicated region
        $region25: #{tpu_custom_call.1} parent=11 // pred_check
          %p595 = pneg %p456
        $region26: #{tpu_custom_call.1} parent=11 // pred_check_branch
          %597 = sbr.rel (%p595) target = $region28
        $region27: #{tpu_custom_call.1} parent=11 // pred_region
          _
        $region28: #{tpu_custom_call.1} parent=11 // pred_fallthru
          _
        // Predicated region
        $region29: #{tpu_custom_call.1} parent=11 // pred_check
          %p598 = pneg %p477
        $region30: #{tpu_custom_call.1} parent=11 // pred_check_branch
          %600 = sbr.rel (%p598) target = $region32
        $region31: #{tpu_custom_call.1} parent=11 // pred_region
          %s602 = ssub.s32 16, 16
          %603 = vsyncadd [#allocation22], %s602
          %s605 = sshll.u32 [#allocation21], 4
          %s606 = int_to_ptr.vmem [resolvable:$true] %s605
          %608 = dma.hbm_to_vmem [thread:$0]  %s16, 16, %s606, [#allocation22]
        $region32: #{tpu_custom_call.1} parent=11 // pred_fallthru
          _
        // Predicated region
        $region33: #{tpu_custom_call.1} parent=11 // pred_check
          %p609 = pneg %p498
        $region34: #{tpu_custom_call.1} parent=11 // pred_check_branch
          %611 = sbr.rel (%p609) target = $region36
        $region35: #{tpu_custom_call.1} parent=11 // pred_region
          _
        $region36: #{tpu_custom_call.1} parent=11 // pred_fallthru
          _
        // Predicated region
        $region37: #{tpu_custom_call.1} parent=11 // pred_check
          %p612 = pneg %p519
        $region38: #{tpu_custom_call.1} parent=11 // pred_check_branch
          %614 = sbr.rel (%p612) target = $region40
        $region39: #{tpu_custom_call.1} parent=11 // pred_region
          _
        $region40: #{tpu_custom_call.1} parent=11 // pred_fallthru
          _
      $region12: #{tpu_custom_call.1} parent=5 // pred_fallthru
        _
      %p615 = scmp.lt.s32.totalorder %s43, 4
      // Predicated region
      $region41: #{tpu_custom_call.1} parent=5 // pred_check
        %p616 = pneg %p615
      $region42: #{tpu_custom_call.1} parent=5 // pred_check_branch
        %618 = sbr.rel (%p616) target = $region44
      $region43: #{tpu_custom_call.1} parent=5 // pred_region
        // Predicated region
        $region45: #{tpu_custom_call.1} parent=43 // pred_check
          %p619 = pneg %p143
        $region46: #{tpu_custom_call.1} parent=43 // pred_check_branch
          %621 = sbr.rel (%p619) target = $region48
        $region47: #{tpu_custom_call.1} parent=43 // pred_region
          %p622 = scmp.lt.s32.totalorder %s51, 1
          %s623 = scalar_select %p622, %s51, 1
          %s624 = smul.addr %s623, 4
          %s625 = smul.addr %s624, 4
          %s626 = scalar_lea.vmem %s3, %s625
        $region48: #{tpu_custom_call.1} parent=43 // pred_fallthru
          _
        // Predicated region
        $region49: #{tpu_custom_call.1} parent=43 // pred_check
          %p627 = pneg %p169
        $region50: #{tpu_custom_call.1} parent=43 // pred_check_branch
          %629 = sbr.rel (%p627) target = $region52
        $region51: #{tpu_custom_call.1} parent=43 // pred_region
          %s630 = sand.u32 %s43, 1
          %s631 = scalar_lea.sflag [#allocation10], %s630
          %s632 = sand.u32 %s159, 1
          %s633 = scalar_lea.vmem [#allocation9], %s632
          %s635 = ssub.s32 16, 16
          %636 = vsyncadd %s631, %s635
          %s637 = smul.addr %s51, 16
          %s638 = scalar_lea.hbm %s4, %s637
          %s640 = sshll.u32 %s633, 4
          %s641 = int_to_ptr.vmem [resolvable:$true] %s640
          %643 = dma.hbm_to_vmem [thread:$0]  %s638, 16, %s641, %s631
        $region52: #{tpu_custom_call.1} parent=43 // pred_fallthru
          _
        // Predicated region
        $region53: #{tpu_custom_call.1} parent=43 // pred_check
          %p644 = pneg %p195
        $region54: #{tpu_custom_call.1} parent=43 // pred_check_branch
          %646 = sbr.rel (%p644) target = $region56
        $region55: #{tpu_custom_call.1} parent=43 // pred_region
          %p647 = scmp.lt.s32.totalorder %s51, 1
          %s648 = scalar_select %p647, %s51, 1
          %s649 = smul.addr %s648, 4
          %s650 = smul.addr %s649, 4
          %s651 = scalar_lea.vmem %s5, %s650
        $region56: #{tpu_custom_call.1} parent=43 // pred_fallthru
          _
        // Predicated region
        $region57: #{tpu_custom_call.1} parent=43 // pred_check
          %p652 = pneg %p221
        $region58: #{tpu_custom_call.1} parent=43 // pred_check_branch
          %654 = sbr.rel (%p652) target = $region60
        $region59: #{tpu_custom_call.1} parent=43 // pred_region
          %s655 = sand.u32 %s43, 1
          %s656 = scalar_lea.sflag [#allocation10], %s655
          %s657 = sand.u32 %s211, 1
          %s658 = scalar_lea.vmem [#allocation11], %s657
          %s660 = ssub.s32 16, 16
          %661 = vsyncadd %s656, %s660
          %s662 = smul.addr %s51, 16
          %s663 = scalar_lea.hbm %s6, %s662
          %s665 = sshll.u32 %s658, 4
          %s666 = int_to_ptr.vmem [resolvable:$true] %s665
          %668 = dma.hbm_to_vmem [thread:$0]  %s663, 16, %s666, %s656
        $region60: #{tpu_custom_call.1} parent=43 // pred_fallthru
          _
        // Predicated region
        $region61: #{tpu_custom_call.1} parent=43 // pred_check
          %p669 = pneg %p247
        $region62: #{tpu_custom_call.1} parent=43 // pred_check_branch
          %671 = sbr.rel (%p669) target = $region64
        $region63: #{tpu_custom_call.1} parent=43 // pred_region
          %s672 = sand.u32 %s43, 1
          %s673 = scalar_lea.sflag [#allocation13], %s672
          %s674 = sand.u32 %s237, 1
          %s675 = scalar_lea.vmem [#allocation12], %s674
          %s677 = ssub.s32 16, 16
          %678 = vsyncadd %s673, %s677
          %s679 = smul.addr %s51, 16
          %s680 = scalar_lea.hbm %s7, %s679
          %s682 = sshll.u32 %s675, 4
          %s683 = int_to_ptr.vmem [resolvable:$true] %s682
          %685 = dma.hbm_to_vmem [thread:$0]  %s680, 16, %s683, %s673
        $region64: #{tpu_custom_call.1} parent=43 // pred_fallthru
          _
        // Predicated region
        $region65: #{tpu_custom_call.1} parent=43 // pred_check
          %p686 = pneg %p273
        $region66: #{tpu_custom_call.1} parent=43 // pred_check_branch
          %688 = sbr.rel (%p686) target = $region68
        $region67: #{tpu_custom_call.1} parent=43 // pred_region
          %s689 = sand.u32 %s43, 1
          %s690 = scalar_lea.sflag [#allocation13], %s689
          %s691 = sand.u32 %s263, 1
          %s692 = scalar_lea.vmem [#allocation14], %s691
          %s694 = ssub.s32 16, 16
          %695 = vsyncadd %s690, %s694
          %s696 = smul.addr %s51, 16
          %s697 = scalar_lea.hbm %s8, %s696
          %s699 = sshll.u32 %s692, 4
          %s700 = int_to_ptr.vmem [resolvable:$true] %s699
          %702 = dma.hbm_to_vmem [thread:$0]  %s697, 16, %s700, %s690
        $region68: #{tpu_custom_call.1} parent=43 // pred_fallthru
          _
        // Predicated region
        $region69: #{tpu_custom_call.1} parent=43 // pred_check
          %p703 = pneg %p299
        $region70: #{tpu_custom_call.1} parent=43 // pred_check_branch
          %705 = sbr.rel (%p703) target = $region72
        $region71: #{tpu_custom_call.1} parent=43 // pred_region
          %p706 = scmp.lt.s32.totalorder %s51, 1
          %s707 = scalar_select %p706, %s51, 1
          %s708 = smul.addr %s707, 4
          %s709 = smul.addr %s708, 4
          %s710 = scalar_lea.vmem %s9, %s709
        $region72: #{tpu_custom_call.1} parent=43 // pred_fallthru
          _
        // Predicated region
        $region73: #{tpu_custom_call.1} parent=43 // pred_check
          %p711 = pneg %p325
        $region74: #{tpu_custom_call.1} parent=43 // pred_check_branch
          %713 = sbr.rel (%p711) target = $region76
        $region75: #{tpu_custom_call.1} parent=43 // pred_region
          %s714 = sand.u32 %s43, 1
          %s715 = scalar_lea.sflag [#allocation16], %s714
          %s716 = sand.u32 %s315, 1
          %s717 = scalar_lea.vmem [#allocation15], %s716
          %s719 = ssub.s32 16, 16
          %720 = vsyncadd %s715, %s719
          %s721 = smul.addr %s51, 16
          %s722 = scalar_lea.hbm %s10, %s721
          %s724 = sshll.u32 %s717, 4
          %s725 = int_to_ptr.vmem [resolvable:$true] %s724
          %727 = dma.hbm_to_vmem [thread:$0]  %s722, 16, %s725, %s715
        $region76: #{tpu_custom_call.1} parent=43 // pred_fallthru
          _
        // Predicated region
        $region77: #{tpu_custom_call.1} parent=43 // pred_check
          %p728 = pneg %p351
        $region78: #{tpu_custom_call.1} parent=43 // pred_check_branch
          %730 = sbr.rel (%p728) target = $region80
        $region79: #{tpu_custom_call.1} parent=43 // pred_region
          %p731 = scmp.lt.s32.totalorder %s51, 1
          %s732 = scalar_select %p731, %s51, 1
          %s733 = smul.addr %s732, 8
          %s734 = smul.addr %s733, 4
          %s735 = scalar_lea.vmem %s11, %s734
        $region80: #{tpu_custom_call.1} parent=43 // pred_fallthru
          _
        // Predicated region
        $region81: #{tpu_custom_call.1} parent=43 // pred_check
          %p736 = pneg %p377
        $region82: #{tpu_custom_call.1} parent=43 // pred_check_branch
          %738 = sbr.rel (%p736) target = $region84
        $region83: #{tpu_custom_call.1} parent=43 // pred_region
          %s739 = sand.u32 %s43, 1
          %s740 = scalar_lea.sflag [#allocation16], %s739
          %s741 = sand.u32 %s367, 1
          %s742 = scalar_lea.vmem [#allocation17], %s741
          %s744 = ssub.s32 16, 16
          %745 = vsyncadd %s740, %s744
          %s746 = smul.addr %s51, 16
          %s747 = scalar_lea.hbm %s12, %s746
          %s749 = sshll.u32 %s742, 4
          %s750 = int_to_ptr.vmem [resolvable:$true] %s749
          %752 = dma.hbm_to_vmem [thread:$0]  %s747, 16, %s750, %s740
        $region84: #{tpu_custom_call.1} parent=43 // pred_fallthru
          _
        // Predicated region
        $region85: #{tpu_custom_call.1} parent=43 // pred_check
          %p753 = pneg %p403
        $region86: #{tpu_custom_call.1} parent=43 // pred_check_branch
          %755 = sbr.rel (%p753) target = $region88
        $region87: #{tpu_custom_call.1} parent=43 // pred_region
          %s756 = sand.u32 %s43, 1
          %s757 = scalar_lea.sflag [#allocation19], %s756
          %s758 = sand.u32 %s393, 1
          %s759 = scalar_lea.vmem [#allocation18], %s758
          %s761 = ssub.s32 16, 16
          %762 = vsyncadd %s757, %s761
          %s763 = smul.addr %s51, 16
          %s764 = scalar_lea.hbm %s13, %s763
          %s766 = sshll.u32 %s759, 4
          %s767 = int_to_ptr.vmem [resolvable:$true] %s766
          %769 = dma.hbm_to_vmem [thread:$0]  %s764, 16, %s767, %s757
        $region88: #{tpu_custom_call.1} parent=43 // pred_fallthru
          _
        // Predicated region
        $region89: #{tpu_custom_call.1} parent=43 // pred_check
          %p770 = pneg %p429
        $region90: #{tpu_custom_call.1} parent=43 // pred_check_branch
          %772 = sbr.rel (%p770) target = $region92
        $region91: #{tpu_custom_call.1} parent=43 // pred_region
          %s773 = sand.u32 %s43, 1
          %s774 = scalar_lea.sflag [#allocation19], %s773
          %s775 = sand.u32 %s419, 1
          %s776 = scalar_lea.vmem [#allocation20], %s775
          %s778 = ssub.s32 16, 16
          %779 = vsyncadd %s774, %s778
          %s780 = smul.addr %s51, 16
          %s781 = scalar_lea.hbm %s14, %s780
          %s783 = sshll.u32 %s776, 4
          %s784 = int_to_ptr.vmem [resolvable:$true] %s783
          %786 = dma.hbm_to_vmem [thread:$0]  %s781, 16, %s784, %s774
        $region92: #{tpu_custom_call.1} parent=43 // pred_fallthru
          _
      $region44: #{tpu_custom_call.1} parent=5 // pred_fallthru
        _
      %p787 = scmp.le.s32.totalorder 1, %s43
      %p788 = scmp.lt.s32.totalorder %s43, 5
      %p789 = pnand %p787, %p788
      %p790 = pneg %p789
      // Predicated region
      $region93: #{tpu_custom_call.1} parent=5 // pred_check
        _
      $region94: #{tpu_custom_call.1} parent=5 // pred_check_branch
        %792 = sbr.rel (%p789) target = $region96
      $region95: #{tpu_custom_call.1} parent=5 // pred_region
        %s793 = ssub.s32 %s43, 1
        // Predicated region
        $region97: #{tpu_custom_call.1} parent=95 // pred_check
          %p794 = pneg %p81
        $region98: #{tpu_custom_call.1} parent=95 // pred_check_branch
          %796 = sbr.rel (%p794) target = $region100
        $region99: #{tpu_custom_call.1} parent=95 // pred_region
          %797 = dma.done [#allocation4], 128
        $region100: #{tpu_custom_call.1} parent=95 // pred_fallthru
          _
        // Predicated region
        $region101: #{tpu_custom_call.1} parent=95 // pred_check
          %p798 = pneg %p102
        $region102: #{tpu_custom_call.1} parent=95 // pred_check_branch
          %800 = sbr.rel (%p798) target = $region104
        $region103: #{tpu_custom_call.1} parent=95 // pred_region
          %801 = dma.done [#allocation7], 16
        $region104: #{tpu_custom_call.1} parent=95 // pred_fallthru
          _
        // Predicated region
        $region105: #{tpu_custom_call.1} parent=95 // pred_check
          %p802 = pneg %p123
        $region106: #{tpu_custom_call.1} parent=95 // pred_check_branch
          %804 = sbr.rel (%p802) target = $region108
        $region107: #{tpu_custom_call.1} parent=95 // pred_region
          %805 = dma.done [#allocation7], 16
        $region108: #{tpu_custom_call.1} parent=95 // pred_fallthru
          _
        %s806 = sand.u32 %s48, 1
        %s807 = scalar_lea.sflag [#allocation10], %s806
        %s808 = sand.u32 %s162, 1
        %s809 = scalar_lea.vmem [#allocation9], %s808
        // Predicated region
        $region109: #{tpu_custom_call.1} parent=95 // pred_check
          %p810 = pneg %p175
        $region110: #{tpu_custom_call.1} parent=95 // pred_check_branch
          %812 = sbr.rel (%p810) target = $region112
        $region111: #{tpu_custom_call.1} parent=95 // pred_region
          %813 = dma.done %s807, 16
        $region112: #{tpu_custom_call.1} parent=95 // pred_fallthru
          _
        %s814 = sand.u32 %s48, 1
        %s815 = scalar_lea.sflag [#allocation10], %s814
        %s816 = sand.u32 %s214, 1
        %s817 = scalar_lea.vmem [#allocation11], %s816
        // Predicated region
        $region113: #{tpu_custom_call.1} parent=95 // pred_check
          %p818 = pneg %p227
        $region114: #{tpu_custom_call.1} parent=95 // pred_check_branch
          %820 = sbr.rel (%p818) target = $region116
        $region115: #{tpu_custom_call.1} parent=95 // pred_region
          %821 = dma.done %s815, 16
        $region116: #{tpu_custom_call.1} parent=95 // pred_fallthru
          _
        %s822 = sand.u32 %s48, 1
        %s823 = scalar_lea.sflag [#allocation13], %s822
        %s824 = sand.u32 %s240, 1
        %s825 = scalar_lea.vmem [#allocation12], %s824
        // Predicated region
        $region117: #{tpu_custom_call.1} parent=95 // pred_check
          %p826 = pneg %p253
        $region118: #{tpu_custom_call.1} parent=95 // pred_check_branch
          %828 = sbr.rel (%p826) target = $region120
        $region119: #{tpu_custom_call.1} parent=95 // pred_region
          %829 = dma.done %s823, 16
        $region120: #{tpu_custom_call.1} parent=95 // pred_fallthru
          _
        %s830 = sand.u32 %s48, 1
        %s831 = scalar_lea.sflag [#allocation13], %s830
        %s832 = sand.u32 %s266, 1
        %s833 = scalar_lea.vmem [#allocation14], %s832
        // Predicated region
        $region121: #{tpu_custom_call.1} parent=95 // pred_check
          %p834 = pneg %p279
        $region122: #{tpu_custom_call.1} parent=95 // pred_check_branch
          %836 = sbr.rel (%p834) target = $region124
        $region123: #{tpu_custom_call.1} parent=95 // pred_region
          %837 = dma.done %s831, 16
        $region124: #{tpu_custom_call.1} parent=95 // pred_fallthru
          _
        %s838 = sand.u32 %s48, 1
        %s839 = scalar_lea.sflag [#allocation16], %s838
        %s840 = sand.u32 %s318, 1
        %s841 = scalar_lea.vmem [#allocation15], %s840
        // Predicated region
        $region125: #{tpu_custom_call.1} parent=95 // pred_check
          %p842 = pneg %p331
        $region126: #{tpu_custom_call.1} parent=95 // pred_check_branch
          %844 = sbr.rel (%p842) target = $region128
        $region127: #{tpu_custom_call.1} parent=95 // pred_region
          %845 = dma.done %s839, 16
        $region128: #{tpu_custom_call.1} parent=95 // pred_fallthru
          _
        %s846 = sand.u32 %s48, 1
        %s847 = scalar_lea.sflag [#allocation16], %s846
        %s848 = sand.u32 %s370, 1
        %s849 = scalar_lea.vmem [#allocation17], %s848
        // Predicated region
        $region129: #{tpu_custom_call.1} parent=95 // pred_check
          %p850 = pneg %p383
        $region130: #{tpu_custom_call.1} parent=95 // pred_check_branch
          %852 = sbr.rel (%p850) target = $region132
        $region131: #{tpu_custom_call.1} parent=95 // pred_region
          %853 = dma.done %s847, 16
        $region132: #{tpu_custom_call.1} parent=95 // pred_fallthru
          _
        %s854 = sand.u32 %s48, 1
        %s855 = scalar_lea.sflag [#allocation19], %s854
        %s856 = sand.u32 %s396, 1
        %s857 = scalar_lea.vmem [#allocation18], %s856
        // Predicated region
        $region133: #{tpu_custom_call.1} parent=95 // pred_check
          %p858 = pneg %p409
        $region134: #{tpu_custom_call.1} parent=95 // pred_check_branch
          %860 = sbr.rel (%p858) target = $region136
        $region135: #{tpu_custom_call.1} parent=95 // pred_region
          %861 = dma.done %s855, 16
        $region136: #{tpu_custom_call.1} parent=95 // pred_fallthru
          _
        %s862 = sand.u32 %s48, 1
        %s863 = scalar_lea.sflag [#allocation19], %s862
        %s864 = sand.u32 %s422, 1
        %s865 = scalar_lea.vmem [#allocation20], %s864
        // Predicated region
        $region137: #{tpu_custom_call.1} parent=95 // pred_check
          %p866 = pneg %p435
        $region138: #{tpu_custom_call.1} parent=95 // pred_check_branch
          %868 = sbr.rel (%p866) target = $region140
        $region139: #{tpu_custom_call.1} parent=95 // pred_region
          %869 = dma.done %s863, 16
        $region140: #{tpu_custom_call.1} parent=95 // pred_fallthru
          _
        // Predicated region
        $region141: #{tpu_custom_call.1} parent=95 // pred_check
          %p870 = pneg %p477
        $region142: #{tpu_custom_call.1} parent=95 // pred_check_branch
          %872 = sbr.rel (%p870) target = $region144
        $region143: #{tpu_custom_call.1} parent=95 // pred_region
          %873 = dma.done [#allocation22], 16
        $region144: #{tpu_custom_call.1} parent=95 // pred_fallthru
          _
        %p874 = pneg %p81
        %p875 = pneg %p78
        %p876 = pneg %p102
        %p877 = pneg %p99
        %p878 = pneg %p123
        %p879 = pneg %p120
        %p880 = scmp.lt.s32.totalorder %s53, 1
        %s881 = scalar_select %p880, %s53, 1
        %s882 = smul.addr %s881, 4
        %s883 = smul.addr %s882, 4
        %s884 = scalar_lea.vmem %s3, %s883
        %p885 = pneg %p149
        %p886 = pneg %p146
        %s887 = sand.u32 %s48, 1
        %s888 = scalar_lea.sflag [#allocation10], %s887
        %s889 = sand.u32 %s162, 1
        %s890 = scalar_lea.vmem [#allocation9], %s889
        %p891 = pneg %p175
        %p892 = pneg %p172
        %p893 = scmp.lt.s32.totalorder %s53, 1
        %s894 = scalar_select %p893, %s53, 1
        %s895 = smul.addr %s894, 4
        %s896 = smul.addr %s895, 4
        %s897 = scalar_lea.vmem %s5, %s896
        %p898 = pneg %p201
        %p899 = pneg %p198
        %s900 = sand.u32 %s48, 1
        %s901 = scalar_lea.sflag [#allocation10], %s900
        %s902 = sand.u32 %s214, 1
        %s903 = scalar_lea.vmem [#allocation11], %s902
        %p904 = pneg %p227
        %p905 = pneg %p224
        %s906 = sand.u32 %s48, 1
        %s907 = scalar_lea.sflag [#allocation13], %s906
        %s908 = sand.u32 %s240, 1
        %s909 = scalar_lea.vmem [#allocation12], %s908
        %p910 = pneg %p253
        %p911 = pneg %p250
        %s912 = sand.u32 %s48, 1
        %s913 = scalar_lea.sflag [#allocation13], %s912
        %s914 = sand.u32 %s266, 1
        %s915 = scalar_lea.vmem [#allocation14], %s914
        %p916 = pneg %p279
        %p917 = pneg %p276
        %p918 = scmp.lt.s32.totalorder %s53, 1
        %s919 = scalar_select %p918, %s53, 1
        %s920 = smul.addr %s919, 4
        %s921 = smul.addr %s920, 4
        %s922 = scalar_lea.vmem %s9, %s921
        %p923 = pneg %p305
        %p924 = pneg %p302
        %s925 = sand.u32 %s48, 1
        %s926 = scalar_lea.sflag [#allocation16], %s925
        %s927 = sand.u32 %s318, 1
        %s928 = scalar_lea.vmem [#allocation15], %s927
        %p929 = pneg %p331
        %p930 = pneg %p328
        %p931 = scmp.lt.s32.totalorder %s53, 1
        %s932 = scalar_select %p931, %s53, 1
        %s933 = smul.addr %s932, 8
        %s934 = smul.addr %s933, 4
        %s935 = scalar_lea.vmem %s11, %s934
        %p936 = pneg %p357
        %p937 = pneg %p354
        %s938 = sand.u32 %s48, 1
        %s939 = scalar_lea.sflag [#allocation16], %s938
        %s940 = sand.u32 %s370, 1
        %s941 = scalar_lea.vmem [#allocation17], %s940
        %p942 = pneg %p383
        %p943 = pneg %p380
        %s944 = sand.u32 %s48, 1
        %s945 = scalar_lea.sflag [#allocation19], %s944
        %s946 = sand.u32 %s396, 1
        %s947 = scalar_lea.vmem [#allocation18], %s946
        %p948 = pneg %p409
        %p949 = pneg %p406
        %s950 = sand.u32 %s48, 1
        %s951 = scalar_lea.sflag [#allocation19], %s950
        %s952 = sand.u32 %s422, 1
        %s953 = scalar_lea.vmem [#allocation20], %s952
        %p954 = pneg %p435
        %p955 = pneg %p432
        %p956 = pneg %p456
        %p957 = pneg %p453
        %p958 = pneg %p477
        %p959 = pneg %p474
        %p960 = pneg %p498
        %p961 = pneg %p495
        %p962 = pneg %p519
        %p963 = pneg %p516
        %p964 = pneg %p545
        %p965 = pneg %p542
        %s966 = sand.u32 %s532, 1
        %s967 = scalar_lea.sflag [#allocation5], %s966
        %s968 = sand.u32 %s532, 1
        %s969 = scalar_lea.vmem [#allocation23], %s968
        %p970 = scmp.lt.s32.totalorder %s53, 1
        %s971 = scalar_select %p970, %s53, 1
        %s972 = smul.addr %s971, 4
        %s973 = smul.addr %s972, 4
        %s974 = scalar_lea.vmem %s3, %s973
        %p975 = scmp.lt.s32.totalorder %s53, 1
        %s976 = scalar_select %p975, %s53, 1
        %s977 = smul.addr %s976, 4
        %s978 = smul.addr %s977, 4
        %s979 = scalar_lea.vmem %s5, %s978
        %p980 = scmp.lt.s32.totalorder %s53, 1
        %s981 = scalar_select %p980, %s53, 1
        %s982 = smul.addr %s981, 4
        %s983 = smul.addr %s982, 4
        %s984 = scalar_lea.vmem %s9, %s983
        %p985 = scmp.lt.s32.totalorder %s53, 1
        %s986 = scalar_select %p985, %s53, 1
        %s987 = smul.addr %s986, 8
        %s988 = smul.addr %s987, 4
        %s989 = scalar_lea.vmem %s11, %s988
        %p991 = scmp.eq.s32.totalorder %s53, 0
        // Predicated region
        $region145: #{tpu_custom_call.1} parent=95 // pred_check
          %p992 = pneg %p991
        $region146: #{tpu_custom_call.1} parent=95 // pred_check_branch
          %994 = sbr.rel (%p992) target = $region148
        $region147: #{tpu_custom_call.1} parent=95 // pred_region
          %v995 = vld [vmem:[#allocation3] sm:$0xff]
          %v996 = vld [vmem:[#allocation6] sm:$0x1]
          %v997 = vld [vmem:[#allocation8] sm:$0x1]
          %vm998 = vcmask 261120
          %v999 = vsel %vm998, %v995, 0.0
          %1000 = vadd.xlane.f32.xlu0 %v999
          %v1001 = vpop.xlane.xlu0 %1000
          %v1002 = vrcp.pop 32.0
          %v1003 = vmul.f32 %v1001, %v1002
          %v1004 = vsub.f32 %v995, %v1003
          %v1005 = vmul.f32 %v1004, %v1004
          %v1006 = vsel %vm998, %v1005, 0.0
          %1007 = vadd.xlane.f32.xlu0 %v1006
          %v1008 = vpop.xlane.xlu0 %1007
          %v1009 = vmul.f32 %v1008, %v1002
          %v1010 = vadd.f32 %v1009, 1e-12
          %v1011 = vrsqrt.pop %v1010
          %v1012 = vmul.f32 %v1004, %v1011
          %v1014 = vlaneseq
          %v1015 = vshrl.u32 %v1014, 7
          %v1016 = vsub.s32 0, %v1015
          %v1017 = vrot.slane %v996, %v1016
          %v1019 = vmul.f32 %v1012, %v1017
          %v1021 = vlaneseq
          %v1022 = vshrl.u32 %v1021, 7
          %v1023 = vsub.s32 0, %v1022
          %v1024 = vrot.slane %v997, %v1023
          %v1026 = vadd.f32 %v1019, %v1024
          %1027 = vst.msk [vmem:[#allocation2] sm:$0xff] %vm998, %v1026
        $region148: #{tpu_custom_call.1} parent=95 // pred_fallthru
          _
        %v1028 = vld [vmem:[#allocation2] sm:$0xff]
        %v1029 = vpack.c.bf16 %v1028, %v1028
        %v1030 = vld [vmem:[%s974] sm:$0xf]
        %v1031 = vld [vmem:[%s974 + $0x4] sm:$0xf]
        %v1032 = vld [vmem:[%s974 + $0x8] sm:$0xf]
        %v1033 = vld [vmem:[%s974 + $0xc] sm:$0xf]
        %v1034 = vld [vmem:[%s809] sm:$0x1]
        %v1036 = vlaneseq
        %v1037 = vshrl.u32 %v1036, 7
        %v1038 = vsub.s32 0, %v1037
        %v1039 = vrot.slane %v1034, %v1038
        %v1045 = vunpack.c.l.b16 %v1030
        %v1046 = vunpack.c.l.b16 %v1031
        %v1047 = vunpack.c.l.b16 %v1032
        %v1048 = vunpack.c.l.b16 %v1033
        %v1049 = vpack.c.b16 %v1046, %v1045
        %v1050 = vpack.c.b16 %v1048, %v1047
        %vm1053 = vcmask 261120
        %v1055 = vsel %vm1053, %v1029, 0
        %1057 = vmatprep.subr.bf16.mxu0 0
        %1058 = vmatpush1.bf16.msra.mxu0 %v1049
        %1059 = vmatprep.subr.bf16.mxu0 0
        %1060 = vmatpush1.bf16.msra.mxu0 %v1050
        %1061 = vmatprep.subr.bf16.mxu0 0
        %1062 = vmatpush1.bf16.msra.mxu0 0
        %1063 = vmatprep.subr.bf16.mxu0 0
        %1064 = vmatpush1.bf16.msra.mxu0 0
        %1065 = vmatprep.subr.bf16.mxu0 0
        %1066 = vmatpush1.bf16.msra.mxu0 0
        %1067 = vmatprep.subr.bf16.mxu0 0
        %1068 = vmatpush1.bf16.msra.mxu0 0
        %1069 = vmatprep.subr.bf16.mxu0 0
        %1070 = vmatpush1.bf16.msra.mxu0 0
        %1071 = vmatprep.subr.bf16.mxu0 0
        %1072 = vmatpush1.bf16.msra.mxu0 0
        %1073 = vmatprep.subr.bf16.mxu0 0
        %1074 = vmatpush1.bf16.msra.mxu0 0
        %1075 = vmatprep.subr.bf16.mxu0 0
        %1076 = vmatpush1.bf16.msra.mxu0 0
        %1077 = vmatprep.subr.bf16.mxu0 0
        %1078 = vmatpush1.bf16.msra.mxu0 0
        %1079 = vmatprep.subr.bf16.mxu0 0
        %1080 = vmatpush1.bf16.msra.mxu0 0
        %1081 = vmatprep.subr.bf16.mxu0 0
        %1082 = vmatpush1.bf16.msra.mxu0 0
        %1083 = vmatprep.subr.bf16.mxu0 0
        %1084 = vmatpush1.bf16.msra.mxu0 0
        %1085 = vmatprep.subr.bf16.mxu0 0
        %1086 = vmatpush1.bf16.msra.mxu0 0
        %1087 = vmatprep.subr.bf16.mxu0 0
        %1088 = vmatpush1.bf16.msra.mxu0 0
        %1089 = vmatprep.mubr.bf16.mxu0 0
        %1090 = vmatmul.mubr.bf16.gmra.mrb[0].mxu0 %v1055
        %v1091 = vpop.f32.mrb[0].mxu0
        %v1092 = vadd.f32 %v1039, %v1091
        %v1093 = vpop.f32.mrb[0].mxu0
        %v1094 = vpop.f32.mrb[0].mxu0
        %v1095 = vpop.f32.mrb[0].mxu0
        %1096 = vdwg.mxu0
        %1098 = vrot.lane.b32.xlu0 %v1092, 120
        %v1099 = vpop.permute.xlu0 %1098
        %1101 = vrot.lane.b32.xlu0 %v1092, 112
        %v1102 = vpop.permute.xlu0 %1101
        %1104 = vrot.lane.b32.xlu0 %v1092, 104
        %v1105 = vpop.permute.xlu0 %1104
        %v1107 = vpack.c.bf16 %v1092, %v1092
        %v1108 = vpack.c.bf16 %v1099, %v1099
        %v1109 = vpack.c.bf16 %v1102, %v1102
        %v1110 = vpack.c.bf16 %v1105, %v1105
        %1112 = vrot.lane.b32.xlu0 %v1107, 96
        %v1113 = vpop.permute.xlu0 %1112
        %vm1114 = vcmask 64512
        %v1116 = vsel %vm1114, %v1107, 0
        %v1119 = vsel %vm1114, %v1113, 0
        %1121 = vmatprep.subr.bf16.mxu0 0
        %1122 = vmatpush1.bf16.xpose.msra.mxu0 %v1119
        %1123 = vmatprep.subr.bf16.mxu0 0
        %1124 = vmatpush1.bf16.xpose.msra.mxu0 0
        %1125 = vmatprep.subr.bf16.mxu0 0
        %1126 = vmatpush1.bf16.xpose.msra.mxu0 0
        %1127 = vmatprep.subr.bf16.mxu0 0
        %1128 = vmatpush1.bf16.xpose.msra.mxu0 0
        %1129 = vmatprep.subr.bf16.mxu0 0
        %1130 = vmatpush1.bf16.xpose.msra.mxu0 0
        %1131 = vmatprep.subr.bf16.mxu0 0
        %1132 = vmatpush1.bf16.xpose.msra.mxu0 0
        %1133 = vmatprep.subr.bf16.mxu0 0
        %1134 = vmatpush1.bf16.xpose.msra.mxu0 0
        %1135 = vmatprep.subr.bf16.mxu0 0
        %1136 = vmatpush1.bf16.xpose.msra.mxu0 0
        %1137 = vmatprep.subr.bf16.mxu0 0
        %1138 = vmatpush1.bf16.xpose.msra.mxu0 0
        %1139 = vmatprep.subr.bf16.mxu0 0
        %1140 = vmatpush1.bf16.xpose.msra.mxu0 0
        %1141 = vmatprep.subr.bf16.mxu0 0
        %1142 = vmatpush1.bf16.xpose.msra.mxu0 0
        %1143 = vmatprep.subr.bf16.mxu0 0
        %1144 = vmatpush1.bf16.xpose.msra.mxu0 0
        %1145 = vmatprep.subr.bf16.mxu0 0
        %1146 = vmatpush1.bf16.xpose.msra.mxu0 0
        %1147 = vmatprep.subr.bf16.mxu0 0
        %1148 = vmatpush1.bf16.xpose.msra.mxu0 0
        %1149 = vmatprep.subr.bf16.mxu0 0
        %1150 = vmatpush1.bf16.xpose.msra.mxu0 0
        %1151 = vmatprep.subr.bf16.mxu0 0
        %1152 = vmatpush1.bf16.xpose.msra.mxu0 0
        %1153 = vmatprep.mubr.bf16.mxu0 0
        %1154 = vmatmul.mubr.bf16.gmra.mrb[0].mxu0 %v1116
        %v1155 = vpop.f32.mrb[0].mxu0
        %v1156 = vadd.f32 0.0, %v1155
        %v1157 = vpop.f32.mrb[0].mxu0
        %v1158 = vpop.f32.mrb[0].mxu0
        %v1159 = vpop.f32.mrb[0].mxu0
        %1160 = vdwg.mxu0
        %1162 = vrot.lane.b32.xlu0 %v1108, 96
        %v1163 = vpop.permute.xlu0 %1162
        %v1165 = vsel %vm1114, %v1108, 0
        %v1168 = vsel %vm1114, %v1163, 0
        %1170 = vmatprep.subr.bf16.mxu0 0
        %1171 = vmatpush1.bf16.xpose.msra.mxu0 %v1168
        %1172 = vmatprep.subr.bf16.mxu0 0
        %1173 = vmatpush1.bf16.xpose.msra.mxu0 0
        %1174 = vmatprep.subr.bf16.mxu0 0
        %1175 = vmatpush1.bf16.xpose.msra.mxu0 0
        %1176 = vmatprep.subr.bf16.mxu0 0
        %1177 = vmatpush1.bf16.xpose.msra.mxu0 0
        %1178 = vmatprep.subr.bf16.mxu0 0
        %1179 = vmatpush1.bf16.xpose.msra.mxu0 0
        %1180 = vmatprep.subr.bf16.mxu0 0
        %1181 = vmatpush1.bf16.xpose.msra.mxu0 0
        %1182 = vmatprep.subr.bf16.mxu0 0
        %1183 = vmatpush1.bf16.xpose.msra.mxu0 0
        %1184 = vmatprep.subr.bf16.mxu0 0
        %1185 = vmatpush1.bf16.xpose.msra.mxu0 0
        %1186 = vmatprep.subr.bf16.mxu0 0
        %1187 = vmatpush1.bf16.xpose.msra.mxu0 0
        %1188 = vmatprep.subr.bf16.mxu0 0
        %1189 = vmatpush1.bf16.xpose.msra.mxu0 0
        %1190 = vmatprep.subr.bf16.mxu0 0
        %1191 = vmatpush1.bf16.xpose.msra.mxu0 0
        %1192 = vmatprep.subr.bf16.mxu0 0
        %1193 = vmatpush1.bf16.xpose.msra.mxu0 0
        %1194 = vmatprep.subr.bf16.mxu0 0
        %1195 = vmatpush1.bf16.xpose.msra.mxu0 0
        %1196 = vmatprep.subr.bf16.mxu0 0
        %1197 = vmatpush1.bf16.xpose.msra.mxu0 0
        %1198 = vmatprep.subr.bf16.mxu0 0
        %1199 = vmatpush1.bf16.xpose.msra.mxu0 0
        %1200 = vmatprep.subr.bf16.mxu0 0
        %1201 = vmatpush1.bf16.xpose.msra.mxu0 0
        %1202 = vmatprep.mubr.bf16.mxu0 0
        %1203 = vmatmul.mubr.bf16.gmra.mrb[0].mxu0 %v1165
        %v1204 = vpop.f32.mrb[0].mxu0
        %v1205 = vadd.f32 0.0, %v1204
        %v1206 = vpop.f32.mrb[0].mxu0
        %v1207 = vpop.f32.mrb[0].mxu0
        %v1208 = vpop.f32.mrb[0].mxu0
        %1209 = vdwg.mxu0
        %1211 = vrot.lane.b32.xlu0 %v1109, 96
        %v1212 = vpop.permute.xlu0 %1211
        %v1214 = vsel %vm1114, %v1109, 0
        %v1217 = vsel %vm1114, %v1212, 0
        %1219 = vmatprep.subr.bf16.mxu0 0
        %1220 = vmatpush1.bf16.xpose.msra.mxu0 %v1217
        %1221 = vmatprep.subr.bf16.mxu0 0
        %1222 = vmatpush1.bf16.xpose.msra.mxu0 0
        %1223 = vmatprep.subr.bf16.mxu0 0
        %1224 = vmatpush1.bf16.xpose.msra.mxu0 0
        %1225 = vmatprep.subr.bf16.mxu0 0
        %1226 = vmatpush1.bf16.xpose.msra.mxu0 0
        %1227 = vmatprep.subr.bf16.mxu0 0
        %1228 = vmatpush1.bf16.xpose.msra.mxu0 0
        %1229 = vmatprep.subr.bf16.mxu0 0
        %1230 = vmatpush1.bf16.xpose.msra.mxu0 0
        %1231 = vmatprep.subr.bf16.mxu0 0
        %1232 = vmatpush1.bf16.xpose.msra.mxu0 0
        %1233 = vmatprep.subr.bf16.mxu0 0
        %1234 = vmatpush1.bf16.xpose.msra.mxu0 0
        %1235 = vmatprep.subr.bf16.mxu0 0
        %1236 = vmatpush1.bf16.xpose.msra.mxu0 0
        %1237 = vmatprep.subr.bf16.mxu0 0
        %1238 = vmatpush1.bf16.xpose.msra.mxu0 0
        %1239 = vmatprep.subr.bf16.mxu0 0
        %1240 = vmatpush1.bf16.xpose.msra.mxu0 0
        %1241 = vmatprep.subr.bf16.mxu0 0
        %1242 = vmatpush1.bf16.xpose.msra.mxu0 0
        %1243 = vmatprep.subr.bf16.mxu0 0
        %1244 = vmatpush1.bf16.xpose.msra.mxu0 0
        %1245 = vmatprep.subr.bf16.mxu0 0
        %1246 = vmatpush1.bf16.xpose.msra.mxu0 0
        %1247 = vmatprep.subr.bf16.mxu0 0
        %1248 = vmatpush1.bf16.xpose.msra.mxu0 0
        %1249 = vmatprep.subr.bf16.mxu0 0
        %1250 = vmatpush1.bf16.xpose.msra.mxu0 0
        %1251 = vmatprep.mubr.bf16.mxu0 0
        %1252 = vmatmul.mubr.bf16.gmra.mrb[0].mxu0 %v1214
        %v1253 = vpop.f32.mrb[0].mxu0
        %v1254 = vadd.f32 0.0, %v1253
        %v1255 = vpop.f32.mrb[0].mxu0
        %v1256 = vpop.f32.mrb[0].mxu0
        %v1257 = vpop.f32.mrb[0].mxu0
        %1258 = vdwg.mxu0
        %1260 = vrot.lane.b32.xlu0 %v1110, 96
        %v1261 = vpop.permute.xlu0 %1260
        %v1263 = vsel %vm1114, %v1110, 0
        %v1266 = vsel %vm1114, %v1261, 0
        %1268 = vmatprep.subr.bf16.mxu0 0
        %1269 = vmatpush1.bf16.xpose.msra.mxu0 %v1266
        %1270 = vmatprep.subr.bf16.mxu0 0
        %1271 = vmatpush1.bf16.xpose.msra.mxu0 0
        %1272 = vmatprep.subr.bf16.mxu0 0
        %1273 = vmatpush1.bf16.xpose.msra.mxu0 0
        %1274 = vmatprep.subr.bf16.mxu0 0
        %1275 = vmatpush1.bf16.xpose.msra.mxu0 0
        %1276 = vmatprep.subr.bf16.mxu0 0
        %1277 = vmatpush1.bf16.xpose.msra.mxu0 0
        %1278 = vmatprep.subr.bf16.mxu0 0
        %1279 = vmatpush1.bf16.xpose.msra.mxu0 0
        %1280 = vmatprep.subr.bf16.mxu0 0
        %1281 = vmatpush1.bf16.xpose.msra.mxu0 0
        %1282 = vmatprep.subr.bf16.mxu0 0
        %1283 = vmatpush1.bf16.xpose.msra.mxu0 0
        %1284 = vmatprep.subr.bf16.mxu0 0
        %1285 = vmatpush1.bf16.xpose.msra.mxu0 0
        %1286 = vmatprep.subr.bf16.mxu0 0
        %1287 = vmatpush1.bf16.xpose.msra.mxu0 0
        %1288 = vmatprep.subr.bf16.mxu0 0
        %1289 = vmatpush1.bf16.xpose.msra.mxu0 0
        %1290 = vmatprep.subr.bf16.mxu0 0
        %1291 = vmatpush1.bf16.xpose.msra.mxu0 0
        %1292 = vmatprep.subr.bf16.mxu0 0
        %1293 = vmatpush1.bf16.xpose.msra.mxu0 0
        %1294 = vmatprep.subr.bf16.mxu0 0
        %1295 = vmatpush1.bf16.xpose.msra.mxu0 0
        %1296 = vmatprep.subr.bf16.mxu0 0
        %1297 = vmatpush1.bf16.xpose.msra.mxu0 0
        %1298 = vmatprep.subr.bf16.mxu0 0
        %1299 = vmatpush1.bf16.xpose.msra.mxu0 0
        %1300 = vmatprep.mubr.bf16.mxu0 0
        %1301 = vmatmul.mubr.bf16.gmra.mrb[0].mxu0 %v1263
        %v1302 = vpop.f32.mrb[0].mxu0
        %v1303 = vadd.f32 0.0, %v1302
        %v1304 = vpop.f32.mrb[0].mxu0
        %v1305 = vpop.f32.mrb[0].mxu0
        %v1306 = vpop.f32.mrb[0].mxu0
        %1307 = vdwg.mxu0
        %v1308 = vmul.f32 %v1156, 0.35355338
        %v1309 = vmul.f32 %v1205, 0.35355338
        %v1310 = vmul.f32 %v1254, 0.35355338
        %v1311 = vmul.f32 %v1303, 0.35355338
        %v1312 = vsel %vm1114, %v1308, -inf
        %1313 = vmax.xlane.f32.xlu0 %v1312
        %v1314 = vpop.xlane.xlu0 %1313
        %v1315 = vsel %vm1114, %v1309, -inf
        %1316 = vmax.xlane.f32.xlu0 %v1315
        %v1317 = vpop.xlane.xlu0 %1316
        %v1318 = vsel %vm1114, %v1310, -inf
        %1319 = vmax.xlane.f32.xlu0 %v1318
        %v1320 = vpop.xlane.xlu0 %1319
        %v1321 = vsel %vm1114, %v1311, -inf
        %1322 = vmax.xlane.f32.xlu0 %v1321
        %v1323 = vpop.xlane.xlu0 %1322
        %v1324 = vsub.f32 %v1308, %v1314
        %v1325 = vsub.f32 %v1309, %v1317
        %v1326 = vsub.f32 %v1310, %v1320
        %v1327 = vsub.f32 %v1311, %v1323
        %v1328 = vmul.f32 %v1324, 1.442695
        %v1329 = vpow.pop %v1328
        %v1330 = vmul.f32 %v1325, 1.442695
        %v1331 = vpow.pop %v1330
        %v1332 = vmul.f32 %v1326, 1.442695
        %v1333 = vpow.pop %v1332
        %v1334 = vmul.f32 %v1327, 1.442695
        %v1335 = vpow.pop %v1334
        %v1336 = vsel %vm1114, %v1329, 0.0
        %1337 = vadd.xlane.f32.xlu0 %v1336
        %v1338 = vpop.xlane.xlu0 %1337
        %v1339 = vsel %vm1114, %v1331, 0.0
        %1340 = vadd.xlane.f32.xlu0 %v1339
        %v1341 = vpop.xlane.xlu0 %1340
        %v1342 = vsel %vm1114, %v1333, 0.0
        %1343 = vadd.xlane.f32.xlu0 %v1342
        %v1344 = vpop.xlane.xlu0 %1343
        %v1345 = vsel %vm1114, %v1335, 0.0
        %1346 = vadd.xlane.f32.xlu0 %v1345
        %v1347 = vpop.xlane.xlu0 %1346
        %v1348 = vrcp.pop %v1338
        %v1349 = vmul.f32 %v1329, %v1348
        %v1350 = vrcp.pop %v1341
        %v1351 = vmul.f32 %v1331, %v1350
        %v1352 = vrcp.pop %v1344
        %v1353 = vmul.f32 %v1333, %v1352
        %v1354 = vrcp.pop %v1347
        %v1355 = vmul.f32 %v1335, %v1354
        %v1356 = vpack.c.bf16 %v1349, %v1349
        %v1357 = vpack.c.bf16 %v1351, %v1351
        %v1358 = vpack.c.bf16 %v1353, %v1353
        %v1359 = vpack.c.bf16 %v1355, %v1355
        %1360 = vrot.lane.b32.xlu0 %v1107, 64
        %v1361 = vpop.permute.xlu0 %1360
        %v1363 = vsel %vm1114, %v1356, 0
        %vm1365 = vcmask 1043456
        %v1367 = vsel %vm1365, %v1361, 0
        %1369 = vmatprep.subr.bf16.mxu0 0
        %1370 = vmatpush1.bf16.msra.mxu0 %v1367
        %1371 = vmatprep.subr.bf16.mxu0 0
        %1372 = vmatpush1.bf16.msra.mxu0 0
        %1373 = vmatprep.subr.bf16.mxu0 0
        %1374 = vmatpush1.bf16.msra.mxu0 0
        %1375 = vmatprep.subr.bf16.mxu0 0
        %1376 = vmatpush1.bf16.msra.mxu0 0
        %1377 = vmatprep.subr.bf16.mxu0 0
        %1378 = vmatpush1.bf16.msra.mxu0 0
        %1379 = vmatprep.subr.bf16.mxu0 0
        %1380 = vmatpush1.bf16.msra.mxu0 0
        %1381 = vmatprep.subr.bf16.mxu0 0
        %1382 = vmatpush1.bf16.msra.mxu0 0
        %1383 = vmatprep.subr.bf16.mxu0 0
        %1384 = vmatpush1.bf16.msra.mxu0 0
        %1385 = vmatprep.subr.bf16.mxu0 0
        %1386 = vmatpush1.bf16.msra.mxu0 0
        %1387 = vmatprep.subr.bf16.mxu0 0
        %1388 = vmatpush1.bf16.msra.mxu0 0
        %1389 = vmatprep.subr.bf16.mxu0 0
        %1390 = vmatpush1.bf16.msra.mxu0 0
        %1391 = vmatprep.subr.bf16.mxu0 0
        %1392 = vmatpush1.bf16.msra.mxu0 0
        %1393 = vmatprep.subr.bf16.mxu0 0
        %1394 = vmatpush1.bf16.msra.mxu0 0
        %1395 = vmatprep.subr.bf16.mxu0 0
        %1396 = vmatpush1.bf16.msra.mxu0 0
        %1397 = vmatprep.subr.bf16.mxu0 0
        %1398 = vmatpush1.bf16.msra.mxu0 0
        %1399 = vmatprep.subr.bf16.mxu0 0
        %1400 = vmatpush1.bf16.msra.mxu0 0
        %1401 = vmatprep.mubr.bf16.mxu0 0
        %1402 = vmatmul.mubr.bf16.gmra.mrb[0].mxu0 %v1363
        %v1403 = vpop.f32.mrb[0].mxu0
        %v1404 = vadd.f32 0.0, %v1403
        %v1405 = vpop.f32.mrb[0].mxu0
        %v1406 = vpop.f32.mrb[0].mxu0
        %v1407 = vpop.f32.mrb[0].mxu0
        %1408 = vdwg.mxu0
        %1409 = vrot.lane.b32.xlu0 %v1108, 64
        %v1410 = vpop.permute.xlu0 %1409
        %v1412 = vsel %vm1114, %v1357, 0
        %v1415 = vsel %vm1365, %v1410, 0
        %1417 = vmatprep.subr.bf16.mxu0 0
        %1418 = vmatpush1.bf16.msra.mxu0 %v1415
        %1419 = vmatprep.subr.bf16.mxu0 0
        %1420 = vmatpush1.bf16.msra.mxu0 0
        %1421 = vmatprep.subr.bf16.mxu0 0
        %1422 = vmatpush1.bf16.msra.mxu0 0
        %1423 = vmatprep.subr.bf16.mxu0 0
        %1424 = vmatpush1.bf16.msra.mxu0 0
        %1425 = vmatprep.subr.bf16.mxu0 0
        %1426 = vmatpush1.bf16.msra.mxu0 0
        %1427 = vmatprep.subr.bf16.mxu0 0
        %1428 = vmatpush1.bf16.msra.mxu0 0
        %1429 = vmatprep.subr.bf16.mxu0 0
        %1430 = vmatpush1.bf16.msra.mxu0 0
        %1431 = vmatprep.subr.bf16.mxu0 0
        %1432 = vmatpush1.bf16.msra.mxu0 0
        %1433 = vmatprep.subr.bf16.mxu0 0
        %1434 = vmatpush1.bf16.msra.mxu0 0
        %1435 = vmatprep.subr.bf16.mxu0 0
        %1436 = vmatpush1.bf16.msra.mxu0 0
        %1437 = vmatprep.subr.bf16.mxu0 0
        %1438 = vmatpush1.bf16.msra.mxu0 0
        %1439 = vmatprep.subr.bf16.mxu0 0
        %1440 = vmatpush1.bf16.msra.mxu0 0
        %1441 = vmatprep.subr.bf16.mxu0 0
        %1442 = vmatpush1.bf16.msra.mxu0 0
        %1443 = vmatprep.subr.bf16.mxu0 0
        %1444 = vmatpush1.bf16.msra.mxu0 0
        %1445 = vmatprep.subr.bf16.mxu0 0
        %1446 = vmatpush1.bf16.msra.mxu0 0
        %1447 = vmatprep.subr.bf16.mxu0 0
        %1448 = vmatpush1.bf16.msra.mxu0 0
        %1449 = vmatprep.mubr.bf16.mxu0 0
        %1450 = vmatmul.mubr.bf16.gmra.mrb[0].mxu0 %v1412
        %v1451 = vpop.f32.mrb[0].mxu0
        %v1452 = vadd.f32 0.0, %v1451
        %v1453 = vpop.f32.mrb[0].mxu0
        %v1454 = vpop.f32.mrb[0].mxu0
        %v1455 = vpop.f32.mrb[0].mxu0
        %1456 = vdwg.mxu0
        %1457 = vrot.lane.b32.xlu0 %v1109, 64
        %v1458 = vpop.permute.xlu0 %1457
        %v1460 = vsel %vm1114, %v1358, 0
        %v1463 = vsel %vm1365, %v1458, 0
        %1465 = vmatprep.subr.bf16.mxu0 0
        %1466 = vmatpush1.bf16.msra.mxu0 %v1463
        %1467 = vmatprep.subr.bf16.mxu0 0
        %1468 = vmatpush1.bf16.msra.mxu0 0
        %1469 = vmatprep.subr.bf16.mxu0 0
        %1470 = vmatpush1.bf16.msra.mxu0 0
        %1471 = vmatprep.subr.bf16.mxu0 0
        %1472 = vmatpush1.bf16.msra.mxu0 0
        %1473 = vmatprep.subr.bf16.mxu0 0
        %1474 = vmatpush1.bf16.msra.mxu0 0
        %1475 = vmatprep.subr.bf16.mxu0 0
        %1476 = vmatpush1.bf16.msra.mxu0 0
        %1477 = vmatprep.subr.bf16.mxu0 0
        %1478 = vmatpush1.bf16.msra.mxu0 0
        %1479 = vmatprep.subr.bf16.mxu0 0
        %1480 = vmatpush1.bf16.msra.mxu0 0
        %1481 = vmatprep.subr.bf16.mxu0 0
        %1482 = vmatpush1.bf16.msra.mxu0 0
        %1483 = vmatprep.subr.bf16.mxu0 0
        %1484 = vmatpush1.bf16.msra.mxu0 0
        %1485 = vmatprep.subr.bf16.mxu0 0
        %1486 = vmatpush1.bf16.msra.mxu0 0
        %1487 = vmatprep.subr.bf16.mxu0 0
        %1488 = vmatpush1.bf16.msra.mxu0 0
        %1489 = vmatprep.subr.bf16.mxu0 0
        %1490 = vmatpush1.bf16.msra.mxu0 0
        %1491 = vmatprep.subr.bf16.mxu0 0
        %1492 = vmatpush1.bf16.msra.mxu0 0
        %1493 = vmatprep.subr.bf16.mxu0 0
        %1494 = vmatpush1.bf16.msra.mxu0 0
        %1495 = vmatprep.subr.bf16.mxu0 0
        %1496 = vmatpush1.bf16.msra.mxu0 0
        %1497 = vmatprep.mubr.bf16.mxu0 0
        %1498 = vmatmul.mubr.bf16.gmra.mrb[0].mxu0 %v1460
        %v1499 = vpop.f32.mrb[0].mxu0
        %v1500 = vadd.f32 0.0, %v1499
        %v1501 = vpop.f32.mrb[0].mxu0
        %v1502 = vpop.f32.mrb[0].mxu0
        %v1503 = vpop.f32.mrb[0].mxu0
        %1504 = vdwg.mxu0
        %1505 = vrot.lane.b32.xlu0 %v1110, 64
        %v1506 = vpop.permute.xlu0 %1505
        %v1508 = vsel %vm1114, %v1359, 0
        %v1511 = vsel %vm1365, %v1506, 0
        %1513 = vmatprep.subr.bf16.mxu0 0
        %1514 = vmatpush1.bf16.msra.mxu0 %v1511
        %1515 = vmatprep.subr.bf16.mxu0 0
        %1516 = vmatpush1.bf16.msra.mxu0 0
        %1517 = vmatprep.subr.bf16.mxu0 0
        %1518 = vmatpush1.bf16.msra.mxu0 0
        %1519 = vmatprep.subr.bf16.mxu0 0
        %1520 = vmatpush1.bf16.msra.mxu0 0
        %1521 = vmatprep.subr.bf16.mxu0 0
        %1522 = vmatpush1.bf16.msra.mxu0 0
        %1523 = vmatprep.subr.bf16.mxu0 0
        %1524 = vmatpush1.bf16.msra.mxu0 0
        %1525 = vmatprep.subr.bf16.mxu0 0
        %1526 = vmatpush1.bf16.msra.mxu0 0
        %1527 = vmatprep.subr.bf16.mxu0 0
        %1528 = vmatpush1.bf16.msra.mxu0 0
        %1529 = vmatprep.subr.bf16.mxu0 0
        %1530 = vmatpush1.bf16.msra.mxu0 0
        %1531 = vmatprep.subr.bf16.mxu0 0
        %1532 = vmatpush1.bf16.msra.mxu0 0
        %1533 = vmatprep.subr.bf16.mxu0 0
        %1534 = vmatpush1.bf16.msra.mxu0 0
        %1535 = vmatprep.subr.bf16.mxu0 0
        %1536 = vmatpush1.bf16.msra.mxu0 0
        %1537 = vmatprep.subr.bf16.mxu0 0
        %1538 = vmatpush1.bf16.msra.mxu0 0
        %1539 = vmatprep.subr.bf16.mxu0 0
        %1540 = vmatpush1.bf16.msra.mxu0 0
        %1541 = vmatprep.subr.bf16.mxu0 0
        %1542 = vmatpush1.bf16.msra.mxu0 0
        %1543 = vmatprep.subr.bf16.mxu0 0
        %1544 = vmatpush1.bf16.msra.mxu0 0
        %1545 = vmatprep.mubr.bf16.mxu0 0
        %1546 = vmatmul.mubr.bf16.gmra.mrb[0].mxu0 %v1508
        %v1547 = vpop.f32.mrb[0].mxu0
        %v1548 = vadd.f32 0.0, %v1547
        %v1549 = vpop.f32.mrb[0].mxu0
        %v1550 = vpop.f32.mrb[0].mxu0
        %v1551 = vpop.f32.mrb[0].mxu0
        %1552 = vdwg.mxu0
        %1554 = vrot.lane.b32.xlu0 %v1452, 8
        %v1555 = vpop.permute.xlu0 %1554
        %1558 = vrot.lane.b32.xlu0 %v1500, 16
        %v1559 = vpop.permute.xlu0 %1558
        %1562 = vrot.lane.b32.xlu0 %v1548, 24
        %v1563 = vpop.permute.xlu0 %1562
        %v1565 = vsel %vm1114, %v1404, %v1555
        %vm1566 = vcmask 130048
        %v1567 = vsel %vm1566, %v1565, %v1559
        %vm1568 = vcmask 195584
        %v1569 = vsel %vm1568, %v1567, %v1563
        %v1570 = vpack.c.bf16 %v1569, %v1569
        %v1571 = vld [vmem:[%s979] sm:$0xf]
        %v1572 = vld [vmem:[%s979 + $0x4] sm:$0xf]
        %v1573 = vld [vmem:[%s979 + $0x8] sm:$0xf]
        %v1574 = vld [vmem:[%s979 + $0xc] sm:$0xf]
        %v1575 = vld [vmem:[%s817] sm:$0x1]
        %v1577 = vlaneseq
        %v1578 = vshrl.u32 %v1577, 7
        %v1579 = vsub.s32 0, %v1578
        %v1580 = vrot.slane %v1575, %v1579
        %v1586 = vunpack.c.l.b16 %v1571
        %v1587 = vunpack.c.l.b16 %v1572
        %v1588 = vunpack.c.l.b16 %v1573
        %v1589 = vunpack.c.l.b16 %v1574
        %v1590 = vpack.c.b16 %v1587, %v1586
        %v1591 = vpack.c.b16 %v1589, %v1588
        %v1595 = vsel %vm1053, %v1570, 0
        %1597 = vmatprep.subr.bf16.mxu0 0
        %1598 = vmatpush1.bf16.msra.mxu0 %v1590
        %1599 = vmatprep.subr.bf16.mxu0 0
        %1600 = vmatpush1.bf16.msra.mxu0 %v1591
        %1601 = vmatprep.subr.bf16.mxu0 0
        %1602 = vmatpush1.bf16.msra.mxu0 0
        %1603 = vmatprep.subr.bf16.mxu0 0
        %1604 = vmatpush1.bf16.msra.mxu0 0
        %1605 = vmatprep.subr.bf16.mxu0 0
        %1606 = vmatpush1.bf16.msra.mxu0 0
        %1607 = vmatprep.subr.bf16.mxu0 0
        %1608 = vmatpush1.bf16.msra.mxu0 0
        %1609 = vmatprep.subr.bf16.mxu0 0
        %1610 = vmatpush1.bf16.msra.mxu0 0
        %1611 = vmatprep.subr.bf16.mxu0 0
        %1612 = vmatpush1.bf16.msra.mxu0 0
        %1613 = vmatprep.subr.bf16.mxu0 0
        %1614 = vmatpush1.bf16.msra.mxu0 0
        %1615 = vmatprep.subr.bf16.mxu0 0
        %1616 = vmatpush1.bf16.msra.mxu0 0
        %1617 = vmatprep.subr.bf16.mxu0 0
        %1618 = vmatpush1.bf16.msra.mxu0 0
        %1619 = vmatprep.subr.bf16.mxu0 0
        %1620 = vmatpush1.bf16.msra.mxu0 0
        %1621 = vmatprep.subr.bf16.mxu0 0
        %1622 = vmatpush1.bf16.msra.mxu0 0
        %1623 = vmatprep.subr.bf16.mxu0 0
        %1624 = vmatpush1.bf16.msra.mxu0 0
        %1625 = vmatprep.subr.bf16.mxu0 0
        %1626 = vmatpush1.bf16.msra.mxu0 0
        %1627 = vmatprep.subr.bf16.mxu0 0
        %1628 = vmatpush1.bf16.msra.mxu0 0
        %1629 = vmatprep.mubr.bf16.mxu0 0
        %1630 = vmatmul.mubr.bf16.gmra.mrb[0].mxu0 %v1595
        %v1631 = vpop.f32.mrb[0].mxu0
        %v1632 = vadd.f32 %v1580, %v1631
        %v1633 = vpop.f32.mrb[0].mxu0
        %v1634 = vpop.f32.mrb[0].mxu0
        %v1635 = vpop.f32.mrb[0].mxu0
        %1636 = vdwg.mxu0
        %v1637 = vadd.f32 %v1028, %v1632
        %v1638 = vld [vmem:[%s825] sm:$0x1]
        %v1639 = vld [vmem:[%s833] sm:$0x1]
        %v1640 = vsel %vm1053, %v1637, 0.0
        %1641 = vadd.xlane.f32.xlu0 %v1640
        %v1642 = vpop.xlane.xlu0 %1641
        %v1643 = vrcp.pop 32.0
        %v1644 = vmul.f32 %v1642, %v1643
        %v1645 = vsub.f32 %v1637, %v1644
        %v1646 = vmul.f32 %v1645, %v1645
        %v1647 = vsel %vm1053, %v1646, 0.0
        %1648 = vadd.xlane.f32.xlu0 %v1647
        %v1649 = vpop.xlane.xlu0 %1648
        %v1650 = vmul.f32 %v1649, %v1643
        %v1651 = vadd.f32 %v1650, 1e-12
        %v1652 = vrsqrt.pop %v1651
        %v1653 = vmul.f32 %v1645, %v1652
        %v1655 = vlaneseq
        %v1656 = vshrl.u32 %v1655, 7
        %v1657 = vsub.s32 0, %v1656
        %v1658 = vrot.slane %v1638, %v1657
        %v1660 = vmul.f32 %v1653, %v1658
        %v1662 = vlaneseq
        %v1663 = vshrl.u32 %v1662, 7
        %v1664 = vsub.s32 0, %v1663
        %v1665 = vrot.slane %v1639, %v1664
        %v1667 = vadd.f32 %v1660, %v1665
        %v1668 = vpack.c.bf16 %v1667, %v1667
        %v1669 = vld [vmem:[%s984] sm:$0xf]
        %v1670 = vld [vmem:[%s984 + $0x4] sm:$0xf]
        %v1671 = vld [vmem:[%s984 + $0x8] sm:$0xf]
        %v1672 = vld [vmem:[%s984 + $0xc] sm:$0xf]
        %v1673 = vld [vmem:[%s841] sm:$0x1]
        %v1675 = vlaneseq
        %v1676 = vshrl.u32 %v1675, 7
        %v1677 = vsub.s32 0, %v1676
        %v1678 = vrot.slane %v1673, %v1677
        %v1684 = vunpack.c.l.b16 %v1669
        %v1685 = vunpack.c.l.b16 %v1670
        %v1686 = vunpack.c.l.b16 %v1671
        %v1687 = vunpack.c.l.b16 %v1672
        %v1688 = vpack.c.b16 %v1685, %v1684
        %v1689 = vpack.c.b16 %v1687, %v1686
        %v1693 = vsel %vm1053, %v1668, 0
        %1695 = vmatprep.subr.bf16.mxu0 0
        %1696 = vmatpush1.bf16.msra.mxu0 %v1688
        %1697 = vmatprep.subr.bf16.mxu0 0
        %1698 = vmatpush1.bf16.msra.mxu0 %v1689
        %1699 = vmatprep.subr.bf16.mxu0 0
        %1700 = vmatpush1.bf16.msra.mxu0 0
        %1701 = vmatprep.subr.bf16.mxu0 0
        %1702 = vmatpush1.bf16.msra.mxu0 0
        %1703 = vmatprep.subr.bf16.mxu0 0
        %1704 = vmatpush1.bf16.msra.mxu0 0
        %1705 = vmatprep.subr.bf16.mxu0 0
        %1706 = vmatpush1.bf16.msra.mxu0 0
        %1707 = vmatprep.subr.bf16.mxu0 0
        %1708 = vmatpush1.bf16.msra.mxu0 0
        %1709 = vmatprep.subr.bf16.mxu0 0
        %1710 = vmatpush1.bf16.msra.mxu0 0
        %1711 = vmatprep.subr.bf16.mxu0 0
        %1712 = vmatpush1.bf16.msra.mxu0 0
        %1713 = vmatprep.subr.bf16.mxu0 0
        %1714 = vmatpush1.bf16.msra.mxu0 0
        %1715 = vmatprep.subr.bf16.mxu0 0
        %1716 = vmatpush1.bf16.msra.mxu0 0
        %1717 = vmatprep.subr.bf16.mxu0 0
        %1718 = vmatpush1.bf16.msra.mxu0 0
        %1719 = vmatprep.subr.bf16.mxu0 0
        %1720 = vmatpush1.bf16.msra.mxu0 0
        %1721 = vmatprep.subr.bf16.mxu0 0
        %1722 = vmatpush1.bf16.msra.mxu0 0
        %1723 = vmatprep.subr.bf16.mxu0 0
        %1724 = vmatpush1.bf16.msra.mxu0 0
        %1725 = vmatprep.subr.bf16.mxu0 0
        %1726 = vmatpush1.bf16.msra.mxu0 0
        %1727 = vmatprep.mubr.bf16.mxu0 0
        %1728 = vmatmul.mubr.bf16.gmra.mrb[0].mxu0 %v1693
        %v1729 = vpop.f32.mrb[0].mxu0
        %v1730 = vadd.f32 %v1678, %v1729
        %v1731 = vpop.f32.mrb[0].mxu0
        %v1732 = vpop.f32.mrb[0].mxu0
        %v1733 = vpop.f32.mrb[0].mxu0
        %1734 = vdwg.mxu0
        %v1735 = vmul.f32 %v1730, %v1730
        %v1736 = vmul.f32 %v1730, %v1735
        %v1737 = vmul.f32 %v1736, 0.044715
        %v1738 = vadd.f32 %v1730, %v1737
        %v1739 = vmul.f32 %v1738, 0.7978846
        %v1740 = vtanh.pop %v1739
        %v1741 = vadd.f32 %v1740, 1.0
        %v1742 = vmul.f32 %v1741, 0.5
        %v1743 = vmul.f32 %v1730, %v1742
        %v1744 = vpack.c.bf16 %v1743, %v1743
        %v1745 = vld [vmem:[%s989] sm:$0xf]
        %v1746 = vld [vmem:[%s989 + $0x4] sm:$0xf]
        %v1747 = vld [vmem:[%s989 + $0x8] sm:$0xf]
        %v1748 = vld [vmem:[%s989 + $0xc] sm:$0xf]
        %v1749 = vld [vmem:[%s989 + $0x10] sm:$0xf]
        %v1750 = vld [vmem:[%s989 + $0x14] sm:$0xf]
        %v1751 = vld [vmem:[%s989 + $0x18] sm:$0xf]
        %v1752 = vld [vmem:[%s989 + $0x1c] sm:$0xf]
        %v1753 = vld [vmem:[%s849] sm:$0x1]
        %v1755 = vlaneseq
        %v1756 = vshrl.u32 %v1755, 7
        %v1757 = vsub.s32 0, %v1756
        %v1758 = vrot.slane %v1753, %v1757
        %v1768 = vunpack.c.l.b16 %v1745
        %v1769 = vunpack.c.l.b16 %v1746
        %v1770 = vunpack.c.l.b16 %v1747
        %v1771 = vunpack.c.l.b16 %v1748
        %v1772 = vunpack.c.l.b16 %v1749
        %v1773 = vunpack.c.l.b16 %v1750
        %v1774 = vunpack.c.l.b16 %v1751
        %v1775 = vunpack.c.l.b16 %v1752
        %v1776 = vpack.c.b16 %v1769, %v1768
        %v1777 = vpack.c.b16 %v1771, %v1770
        %v1778 = vpack.c.b16 %v1773, %v1772
        %v1779 = vpack.c.b16 %v1775, %v1774
        %vm1784 = vcmask 523264
        %v1786 = vsel %vm1784, %v1744, 0
        %1788 = vmatprep.subr.bf16.mxu0 0
        %1789 = vmatpush1.bf16.msra.mxu0 %v1776
        %1790 = vmatprep.subr.bf16.mxu0 0
        %1791 = vmatpush1.bf16.msra.mxu0 %v1777
        %1792 = vmatprep.subr.bf16.mxu0 0
        %1793 = vmatpush1.bf16.msra.mxu0 %v1778
        %1794 = vmatprep.subr.bf16.mxu0 0
        %1795 = vmatpush1.bf16.msra.mxu0 %v1779
        %1796 = vmatprep.subr.bf16.mxu0 0
        %1797 = vmatpush1.bf16.msra.mxu0 0
        %1798 = vmatprep.subr.bf16.mxu0 0
        %1799 = vmatpush1.bf16.msra.mxu0 0
        %1800 = vmatprep.subr.bf16.mxu0 0
        %1801 = vmatpush1.bf16.msra.mxu0 0
        %1802 = vmatprep.subr.bf16.mxu0 0
        %1803 = vmatpush1.bf16.msra.mxu0 0
        %1804 = vmatprep.subr.bf16.mxu0 0
        %1805 = vmatpush1.bf16.msra.mxu0 0
        %1806 = vmatprep.subr.bf16.mxu0 0
        %1807 = vmatpush1.bf16.msra.mxu0 0
        %1808 = vmatprep.subr.bf16.mxu0 0
        %1809 = vmatpush1.bf16.msra.mxu0 0
        %1810 = vmatprep.subr.bf16.mxu0 0
        %1811 = vmatpush1.bf16.msra.mxu0 0
        %1812 = vmatprep.subr.bf16.mxu0 0
        %1813 = vmatpush1.bf16.msra.mxu0 0
        %1814 = vmatprep.subr.bf16.mxu0 0
        %1815 = vmatpush1.bf16.msra.mxu0 0
        %1816 = vmatprep.subr.bf16.mxu0 0
        %1817 = vmatpush1.bf16.msra.mxu0 0
        %1818 = vmatprep.subr.bf16.mxu0 0
        %1819 = vmatpush1.bf16.msra.mxu0 0
        %1820 = vmatprep.mubr.bf16.mxu0 0
        %1821 = vmatmul.mubr.bf16.gmra.mrb[0].mxu0 %v1786
        %v1822 = vpop.f32.mrb[0].mxu0
        %v1823 = vadd.f32 %v1758, %v1822
        %v1824 = vpop.f32.mrb[0].mxu0
        %v1825 = vpop.f32.mrb[0].mxu0
        %v1826 = vpop.f32.mrb[0].mxu0
        %1827 = vdwg.mxu0
        %v1828 = vadd.f32 %v1667, %v1823
        %v1829 = vld [vmem:[%s857] sm:$0x1]
        %v1830 = vld [vmem:[%s865] sm:$0x1]
        %v1831 = vsel %vm1053, %v1828, 0.0
        %1832 = vadd.xlane.f32.xlu0 %v1831
        %v1833 = vpop.xlane.xlu0 %1832
        %v1834 = vmul.f32 %v1833, %v1643
        %v1835 = vsub.f32 %v1828, %v1834
        %v1836 = vmul.f32 %v1835, %v1835
        %v1837 = vsel %vm1053, %v1836, 0.0
        %1838 = vadd.xlane.f32.xlu0 %v1837
        %v1839 = vpop.xlane.xlu0 %1838
        %v1840 = vmul.f32 %v1839, %v1643
        %v1841 = vadd.f32 %v1840, 1e-12
        %v1842 = vrsqrt.pop %v1841
        %v1843 = vmul.f32 %v1835, %v1842
        %v1845 = vlaneseq
        %v1846 = vshrl.u32 %v1845, 7
        %v1847 = vsub.s32 0, %v1846
        %v1848 = vrot.slane %v1829, %v1847
        %v1850 = vmul.f32 %v1843, %v1848
        %v1852 = vlaneseq
        %v1853 = vshrl.u32 %v1852, 7
        %v1854 = vsub.s32 0, %v1853
        %v1855 = vrot.slane %v1830, %v1854
        %v1857 = vadd.f32 %v1850, %v1855
        %1858 = vst.msk [vmem:[#allocation2] sm:$0xff] %vm1053, %v1857
        %p1859 = scmp.eq.s32.totalorder %s53, 1
        // Predicated region
        $region149: #{tpu_custom_call.1} parent=95 // pred_check
          %p1860 = pneg %p1859
        $region150: #{tpu_custom_call.1} parent=95 // pred_check_branch
          %1862 = sbr.rel (%p1860) target = $region152
        $region151: #{tpu_custom_call.1} parent=95 // pred_region
          %v1863 = vpack.c.bf16 %v1857, %v1857
          %v1864 = vld [vmem:[%s15] sm:$0xf]
          %v1865 = vld [vmem:[%s15 + $0x4] sm:$0xf]
          %v1866 = vld [vmem:[%s15 + $0x8] sm:$0xf]
          %v1867 = vld [vmem:[%s15 + $0xc] sm:$0xf]
          %v1868 = vld [vmem:[#allocation21] sm:$0x1]
          %v1873 = vunpack.c.l.b16 %v1864
          %v1874 = vunpack.c.l.b16 %v1865
          %v1875 = vunpack.c.l.b16 %v1866
          %v1876 = vunpack.c.l.b16 %v1867
          %v1877 = vpack.c.b16 %v1874, %v1873
          %v1878 = vpack.c.b16 %v1876, %v1875
          %v1882 = vsel %vm1053, %v1863, 0
          %1884 = vmatprep.subr.bf16.mxu0 0
          %1885 = vmatpush1.bf16.msra.mxu0 %v1877
          %1886 = vmatprep.subr.bf16.mxu0 0
          %1887 = vmatpush1.bf16.msra.mxu0 %v1878
          %1888 = vmatprep.subr.bf16.mxu0 0
          %1889 = vmatpush1.bf16.msra.mxu0 0
          %1890 = vmatprep.subr.bf16.mxu0 0
          %1891 = vmatpush1.bf16.msra.mxu0 0
          %1892 = vmatprep.subr.bf16.mxu0 0
          %1893 = vmatpush1.bf16.msra.mxu0 0
          %1894 = vmatprep.subr.bf16.mxu0 0
          %1895 = vmatpush1.bf16.msra.mxu0 0
          %1896 = vmatprep.subr.bf16.mxu0 0
          %1897 = vmatpush1.bf16.msra.mxu0 0
          %1898 = vmatprep.subr.bf16.mxu0 0
          %1899 = vmatpush1.bf16.msra.mxu0 0
          %1900 = vmatprep.subr.bf16.mxu0 0
          %1901 = vmatpush1.bf16.msra.mxu0 0
          %1902 = vmatprep.subr.bf16.mxu0 0
          %1903 = vmatpush1.bf16.msra.mxu0 0
          %1904 = vmatprep.subr.bf16.mxu0 0
          %1905 = vmatpush1.bf16.msra.mxu0 0
          %1906 = vmatprep.subr.bf16.mxu0 0
          %1907 = vmatpush1.bf16.msra.mxu0 0
          %1908 = vmatprep.subr.bf16.mxu0 0
          %1909 = vmatpush1.bf16.msra.mxu0 0
          %1910 = vmatprep.subr.bf16.mxu0 0
          %1911 = vmatpush1.bf16.msra.mxu0 0
          %1912 = vmatprep.subr.bf16.mxu0 0
          %1913 = vmatpush1.bf16.msra.mxu0 0
          %1914 = vmatprep.subr.bf16.mxu0 0
          %1915 = vmatpush1.bf16.msra.mxu0 0
          %1916 = vmatprep.mubr.bf16.mxu0 0
          %1917 = vmatmul.mubr.bf16.gmra.mrb[0].mxu0 %v1882
          %v1918 = vpop.f32.mrb[0].mxu0
          %v1919 = vadd.f32 %v1868, %v1918
          %v1920 = vpop.f32.mrb[0].mxu0
          %v1921 = vpop.f32.mrb[0].mxu0
          %v1922 = vpop.f32.mrb[0].mxu0
          %1923 = vdwg.mxu0
          %v1924 = vtanh.pop %v1919
          %v1925 = vpack.c.bf16 %v1924, %v1924
          %v1926 = vld [vmem:[%s17] sm:$0xf]
          %v1927 = vld [vmem:[%s17 + $0x4] sm:$0xf]
          %v1928 = vld [vmem:[%s17 + $0x8] sm:$0xf]
          %v1929 = vld [vmem:[%s17 + $0xc] sm:$0xf]
          %v1930 = vld [vmem:[%s18] sm:$0x1]
          %v1935 = vunpack.c.l.b16 %v1926
          %v1936 = vunpack.c.l.b16 %v1927
          %v1937 = vunpack.c.l.b16 %v1928
          %v1938 = vunpack.c.l.b16 %v1929
          %v1939 = vpack.c.b16 %v1936, %v1935
          %v1940 = vpack.c.b16 %v1938, %v1937
          %v1944 = vsel %vm1053, %v1925, 0
          %1946 = vmatprep.subr.bf16.mxu0 0
          %1947 = vmatpush1.bf16.msra.mxu0 %v1939
          %1948 = vmatprep.subr.bf16.mxu0 0
          %1949 = vmatpush1.bf16.msra.mxu0 %v1940
          %1950 = vmatprep.subr.bf16.mxu0 0
          %1951 = vmatpush1.bf16.msra.mxu0 0
          %1952 = vmatprep.subr.bf16.mxu0 0
          %1953 = vmatpush1.bf16.msra.mxu0 0
          %1954 = vmatprep.subr.bf16.mxu0 0
          %1955 = vmatpush1.bf16.msra.mxu0 0
          %1956 = vmatprep.subr.bf16.mxu0 0
          %1957 = vmatpush1.bf16.msra.mxu0 0
          %1958 = vmatprep.subr.bf16.mxu0 0
          %1959 = vmatpush1.bf16.msra.mxu0 0
          %1960 = vmatprep.subr.bf16.mxu0 0
          %1961 = vmatpush1.bf16.msra.mxu0 0
          %1962 = vmatprep.subr.bf16.mxu0 0
          %1963 = vmatpush1.bf16.msra.mxu0 0
          %1964 = vmatprep.subr.bf16.mxu0 0
          %1965 = vmatpush1.bf16.msra.mxu0 0
          %1966 = vmatprep.subr.bf16.mxu0 0
          %1967 = vmatpush1.bf16.msra.mxu0 0
          %1968 = vmatprep.subr.bf16.mxu0 0
          %1969 = vmatpush1.bf16.msra.mxu0 0
          %1970 = vmatprep.subr.bf16.mxu0 0
          %1971 = vmatpush1.bf16.msra.mxu0 0
          %1972 = vmatprep.subr.bf16.mxu0 0
          %1973 = vmatpush1.bf16.msra.mxu0 0
          %1974 = vmatprep.subr.bf16.mxu0 0
          %1975 = vmatpush1.bf16.msra.mxu0 0
          %1976 = vmatprep.subr.bf16.mxu0 0
          %1977 = vmatpush1.bf16.msra.mxu0 0
          %1978 = vmatprep.mubr.bf16.mxu0 0
          %1979 = vmatmul.mubr.bf16.gmra.mrb[0].mxu0 %v1944
          %v1980 = vpop.f32.mrb[0].mxu0
          %v1981 = vadd.f32 %v1930, %v1980
          %v1982 = vpop.f32.mrb[0].mxu0
          %v1983 = vpop.f32.mrb[0].mxu0
          %v1984 = vpop.f32.mrb[0].mxu0
          %1985 = vdwg.mxu0
          %1986 = vst [vmem:[%s969] sm:$0x1] %v1981
        $region152: #{tpu_custom_call.1} parent=95 // pred_fallthru
          _
        %s1987 = sand.u32 %s532, 1
        %s1988 = scalar_lea.sflag [#allocation5], %s1987
        %s1989 = sand.u32 %s532, 1
        %s1990 = scalar_lea.vmem [#allocation23], %s1989
        // Predicated region
        $region153: #{tpu_custom_call.1} parent=95 // pred_check
          %p1991 = pneg %p542
        $region154: #{tpu_custom_call.1} parent=95 // pred_check_branch
          %1993 = sbr.rel (%p1991) target = $region156
        $region155: #{tpu_custom_call.1} parent=95 // pred_region
          %s1995 = ssub.s32 16, 16
          %1996 = vsyncadd %s1988, %s1995
          %s1997 = smul.addr %s52, 16
          %s1998 = scalar_lea.hbm %s19, %s1997
          %s2000 = sshll.u32 %s1990, 4
          %s2001 = int_to_ptr.vmem [resolvable:$true] %s2000
          %2003 = dma.vmem_to_hbm [thread:$0]  %s2001, 16, %s1998, %s1988
        $region156: #{tpu_custom_call.1} parent=95 // pred_fallthru
          _
      $region96: #{tpu_custom_call.1} parent=5 // pred_fallthru
        _
      %p2004 = scmp.le.s32.totalorder 2, %s43
      // Predicated region
      $region157: #{tpu_custom_call.1} parent=5 // pred_check
        %p2005 = pneg %p2004
      $region158: #{tpu_custom_call.1} parent=5 // pred_check_branch
        %2007 = sbr.rel (%p2005) target = $region160
      $region159: #{tpu_custom_call.1} parent=5 // pred_region
        %s2008 = ssub.s32 %s43, 2
        // Predicated region
        $region161: #{tpu_custom_call.1} parent=159 // pred_check
          %p2009 = pneg %p548
        $region162: #{tpu_custom_call.1} parent=159 // pred_check_branch
          %2011 = sbr.rel (%p2009) target = $region164
        $region163: #{tpu_custom_call.1} parent=159 // pred_region
          %s2012 = sand.u32 %s533, 1
          %s2013 = scalar_lea.sflag [#allocation5], %s2012
          %s2014 = sand.u32 %s533, 1
          %s2015 = scalar_lea.vmem [#allocation23], %s2014
          %2016 = dma.done %s2013, 16
        $region164: #{tpu_custom_call.1} parent=159 // pred_fallthru
          _
      $region160: #{tpu_custom_call.1} parent=5 // pred_fallthru
        _
    $region6: #{tpu_custom_call.1} parent=1 // loop_footer
      %s47 = sadd.s32 1, %s43
    $region7: #{tpu_custom_call.1} parent=1 // loop_footer_branch
      %42 = sbr.rel target = $region3
    $region8: #{tpu_custom_call.1} parent=1 // loop_exit
      _
    %2017 = vsyncpa [#allocation4], 1
    %s2018 = scalar_lea.sflag [#allocation4], 1
    %2019 = vsyncpa %s2018, 1
    %2020 = vsyncpa [#allocation7], 1
    %2021 = vsyncpa [#allocation10], 1
    %s2022 = scalar_lea.sflag [#allocation10], 1
    %2023 = vsyncpa %s2022, 1
    %2024 = vsyncpa [#allocation13], 1
    %s2025 = scalar_lea.sflag [#allocation13], 1
    %2026 = vsyncpa %s2025, 1
    %2027 = vsyncpa [#allocation16], 1
    %s2028 = scalar_lea.sflag [#allocation16], 1
    %2029 = vsyncpa %s2028, 1
    %2030 = vsyncpa [#allocation19], 1
    %s2031 = scalar_lea.sflag [#allocation19], 1
    %2032 = vsyncpa %s2031, 1
    %2033 = vsyncpa [#allocation22], 1
    %2034 = vsyncpa [#allocation5], 1
    %s2035 = scalar_lea.sflag [#allocation5], 1
    %2036 = vsyncpa %s2035, 1

</llo_original>
